<compile_context>
chip_gen: v7x
topology: tpu7x:2x2x1
jax: 0.10.0
libtpu: 0.0.40
codegen_flags: <defaults>
</compile_context>

<pallas_src>
import functools

import jax
import jax.numpy as jnp
from jax import lax
from jax.experimental import pallas as pl
from jax.experimental.pallas import tpu as pltpu


def _activate(y, activation):
    if activation == "relu":
        return jnp.maximum(y, 0.0)
    elif activation == "hswish":            # x * relu6(x + 3) / 6
        return y * jnp.clip(y + 3.0, 0.0, 6.0) * (1.0 / 6.0)
    raise ValueError(f"unsupported activation: {activation}")
    # TODO(synk): the PyTorch module accepts an arbitrary `nolinear` module;
    # only ReLU and hardswish are implemented here.


def dp_conv_kernel(x_ref, wdw_ref, bias_ref, wpw_ref, out_ref, xpad_ref, *,
                   kernel_size, stride, pad, out_h, out_w, activation):
    """Per-batch-element fused depthwise-conv + BN(bias) + act + 1x1-conv."""
    k, s = kernel_size, stride
    _, H, W, c_in = x_ref.shape

    # Build the zero-padded input in VMEM (halo handled in-kernel; the padded
    # tensor never exists in HBM).
    xpad_ref[...] = jnp.zeros_like(xpad_ref)
    xpad_ref[pl.ds(pad, H), pl.ds(pad, W), :] = x_ref[0]
    xv = xpad_ref[...]

    wdw = wdw_ref[...]                       # (k, k, C_in), BN scale pre-folded
    # Start the accumulator at the folded BN bias (saves a separate add pass).
    acc = jnp.broadcast_to(bias_ref[0], (out_h, out_w, c_in)).astype(jnp.float32)

    # Depthwise conv (groups == C_in): k*k shifted/strided taps, f32 accumulate.
    for kh in range(k):
        for kw in range(k):
            patch = lax.slice(
                xv,
                (kh, kw, 0),
                (kh + (out_h - 1) * s + 1, kw + (out_w - 1) * s + 1, c_in),
                (s, s, 1))
            acc = acc + patch * wdw[kh, kw, :]

    y = _activate(acc, activation)

    # Pointwise 1x1 conv on the MXU with a lane-dense (C_out, H*W) result:
    # contract C_in of (C_out, C_in) with C_in of (H*W, C_in)  ==  wpw @ y^T.
    y2 = y.reshape(out_h * out_w, c_in).astype(x_ref.dtype)   # layout-preserving
    o = lax.dot_general(wpw_ref[...], y2, (((1,), (1,)), ((), ())),
                        preferred_element_type=jnp.float32)
    out_ref[0] = o.astype(out_ref.dtype)


def dp_conv(x_nchw, w_dw, bn_gamma, bn_beta, bn_mean, bn_var, w_pw, *,
            kernel_size, stride, activation="relu", eps=1e-5):
    """Wrapper: NCHW in / NCHW out, matching the PyTorch module."""
    N, C_in, H, W = x_nchw.shape
    C_out = w_pw.shape[0]
    pad = kernel_size // 2
    out_h = (H + 2 * pad - kernel_size) // stride + 1
    out_w = (W + 2 * pad - kernel_size) // stride + 1
    Hp, Wp = H + 2 * pad, W + 2 * pad

    x = jnp.transpose(x_nchw, (0, 2, 3, 1))                    # NHWC (no pad)

    # Fold BN (inference mode) scale into the depthwise weights; keep bias.
    # TODO(synk): PyTorch BatchNorm2d in training mode uses batch statistics;
    # here we reproduce eval/inference semantics (running stats).
    inv_std = 1.0 / jnp.sqrt(bn_var.astype(jnp.float32) + eps)
    scale = bn_gamma.astype(jnp.float32) * inv_std              # (C_in,)
    bias = bn_beta.astype(jnp.float32) - bn_mean.astype(jnp.float32) * scale

    wdw = jnp.transpose(w_dw[:, 0, :, :], (1, 2, 0))            # (k, k, C_in)
    wdw_scaled = (wdw * scale[None, None, :]).astype(x.dtype)
    wpw_t = w_pw[:, :, 0, 0].astype(x.dtype)                    # (C_out, C_in)
    bias2 = bias.reshape(1, C_in)

    kern = functools.partial(dp_conv_kernel, kernel_size=kernel_size,
                             stride=stride, pad=pad, out_h=out_h, out_w=out_w,
                             activation=activation)

    out = pl.pallas_call(
        kern,
        out_shape=jax.ShapeDtypeStruct((N, C_out, out_h * out_w), x.dtype),
        grid=(N,),
        in_specs=[
            pl.BlockSpec((1, H, W, C_in), lambda n: (n, 0, 0, 0)),
            pl.BlockSpec((kernel_size, kernel_size, C_in), lambda n: (0, 0, 0)),
            pl.BlockSpec((1, C_in), lambda n: (0, 0)),
            pl.BlockSpec((C_out, C_in), lambda n: (0, 0)),
        ],
        out_specs=pl.BlockSpec((1, C_out, out_h * out_w), lambda n: (n, 0, 0)),
        scratch_shapes=[pltpu.VMEM((Hp, Wp, C_in), x.dtype)],
        compiler_params=pltpu.CompilerParams(
            dimension_semantics=("parallel",)),
    )(x, wdw_scaled, bias2, wpw_t)

    # Contiguous reshape only — no output transpose.
    return out.reshape(N, C_out, out_h, out_w)


def ref_dp_conv(x, w_dw, gamma, beta, mean, var, w_pw, *, kernel_size, stride,
                activation="relu", eps=1e-5):
    """Pure-JAX reference (mirrors the PyTorch forward, eval-mode BN)."""
    pad = kernel_size // 2
    dw = lax.conv_general_dilated(
        x, w_dw, window_strides=(stride, stride),
        padding=[(pad, pad), (pad, pad)],
        dimension_numbers=("NCHW", "OIHW", "NCHW"),
        feature_group_count=x.shape[1])
    scale = gamma / jnp.sqrt(var + eps)
    bias = beta - mean * scale
    y = dw * scale[None, :, None, None] + bias[None, :, None, None]
    y = _activate(y, activation)
    return lax.conv_general_dilated(
        y, w_pw, window_strides=(1, 1), padding="VALID",
        dimension_numbers=("NCHW", "OIHW", "NCHW"))


if __name__ == "__main__":
    # Shapes consistent with DP_Conv(kernel_size=3, in_size=4, out_size=8, ...)
    kernel_size, in_size, out_size = 3, 4, 8
    N, H, W = 2, 16, 16

    key = jax.random.PRNGKey(0)
    kx, kdw, kpw, kg, kb, km, kv = jax.random.split(key, 7)

    x = jax.random.normal(kx, (N, in_size, H, W), jnp.float32)
    # PyTorch parameter shapes: conv1.weight (C_in,1,k,k), conv2.weight (C_out,C_in,1,1)
    w_dw = jax.random.normal(kdw, (in_size, 1, kernel_size, kernel_size),
                             jnp.float32) * 0.3
    w_pw = jax.random.normal(kpw, (out_size, in_size, 1, 1), jnp.float32) * 0.3
    bn_gamma = 1.0 + 0.1 * jax.random.normal(kg, (in_size,), jnp.float32)
    bn_beta = 0.1 * jax.random.normal(kb, (in_size,), jnp.float32)
    bn_mean = 0.1 * jax.random.normal(km, (in_size,), jnp.float32)
    bn_var = jnp.abs(jax.random.normal(kv, (in_size,), jnp.float32)) + 0.5

    pad = kernel_size // 2
    for stride, activation in [(1, "relu"), (2, "relu"), (1, "hswish")]:
        out = dp_conv(x, w_dw, bn_gamma, bn_beta, bn_mean, bn_var, w_pw,
                      kernel_size=kernel_size, stride=stride,
                      activation=activation)
        out = jax.block_until_ready(out)
        ref = ref_dp_conv(x, w_dw, bn_gamma, bn_beta, bn_mean, bn_var, w_pw,
                          kernel_size=kernel_size, stride=stride,
                          activation=activation)
        out_hw = (H + 2 * pad - kernel_size) // stride + 1
        assert out.shape == (N, out_size, out_hw, out_hw), out.shape
        max_err = float(jnp.max(jnp.abs(out - ref)))
        assert jnp.allclose(out, ref, atol=1e-4, rtol=1e-4), \
            (stride, activation, max_err)

    print("KERNEL_OK")
</pallas_src>

<mosaic_0001>
module attributes {stable_mosaic.version = 11 : i64} {
  func.func @dp_conv_kernel(%arg0: i32, %arg1: memref<1x16x16x4xf32, #tpu.memory_space<vmem>>, %arg2: memref<3x3x4xf32, #tpu.memory_space<vmem>>, %arg3: memref<1x4xf32, #tpu.memory_space<vmem>>, %arg4: memref<8x4xf32, #tpu.memory_space<vmem>>, %arg5: memref<1x8x256xf32, #tpu.memory_space<vmem>>, %arg6: memref<18x18x4xf32, #tpu.memory_space<vmem>>) attributes {dimension_semantics = [#tpu.dimension_semantics<parallel>], iteration_bounds = array<i64: 2>, scalar_prefetch = 0 : i64, scratch_operands = 1 : i64, tpu.core_type = #tpu.core_type<tc>, window_params = [{transform_indices = @transform_0, window_bounds = array<i64: 1, 16, 16, 4>}, {pipeline_mode = #tpu.pipeline_mode<synchronous>, transform_indices = @transform_1, window_bounds = array<i64: 3, 3, 4>}, {pipeline_mode = #tpu.pipeline_mode<synchronous>, transform_indices = @transform_2, window_bounds = array<i64: 1, 4>}, {pipeline_mode = #tpu.pipeline_mode<synchronous>, transform_indices = @transform_3, window_bounds = array<i64: 8, 4>}, {transform_indices = @transform_4, window_bounds = array<i64: 1, 8, 256>}]} {
    %cst = arith.constant 0.000000e+00 : f32
    %0 = vector.broadcast %cst : f32 to vector<18x18x4xf32>
    %c0 = arith.constant 0 : index
    %c0_0 = arith.constant 0 : index
    %c0_1 = arith.constant 0 : index
    %1 = vector.load %arg6[%c0, %c0_0, %c0_1] : memref<18x18x4xf32, #tpu.memory_space<vmem>>, vector<18x18x4xf32>
    tpu.vector_store %arg6[%c0, %c0_0, %c0_1], %0 {strides = array<i32>} : memref<18x18x4xf32, #tpu.memory_space<vmem>>, vector<18x18x4xf32>,
    %c0_2 = arith.constant 0 : index
    %c0_3 = arith.constant 0 : index
    %c0_4 = arith.constant 0 : index
    %c0_5 = arith.constant 0 : index
    %2 = vector.load %arg1[%c0_2, %c0_3, %c0_4, %c0_5] : memref<1x16x16x4xf32, #tpu.memory_space<vmem>>, vector<1x16x16x4xf32>
    %3 = vector.shape_cast %2 : vector<1x16x16x4xf32> to vector<16x16x4xf32>
    %c1 = arith.constant 1 : index
    %c1_6 = arith.constant 1 : index
    %c0_7 = arith.constant 0 : index
    %4 = vector.load %arg6[%c1, %c1_6, %c0_7] : memref<18x18x4xf32, #tpu.memory_space<vmem>>, vector<16x16x4xf32>
    tpu.vector_store %arg6[%c1, %c1_6, %c0_7], %3 {strides = array<i32>} : memref<18x18x4xf32, #tpu.memory_space<vmem>>, vector<16x16x4xf32>,
    %c0_8 = arith.constant 0 : index
    %c0_9 = arith.constant 0 : index
    %c0_10 = arith.constant 0 : index
    %5 = vector.load %arg6[%c0_8, %c0_9, %c0_10] : memref<18x18x4xf32, #tpu.memory_space<vmem>>, vector<18x18x4xf32>
    %c0_11 = arith.constant 0 : index
    %c0_12 = arith.constant 0 : index
    %c0_13 = arith.constant 0 : index
    %6 = vector.load %arg2[%c0_11, %c0_12, %c0_13] : memref<3x3x4xf32, #tpu.memory_space<vmem>>, vector<3x3x4xf32>
    %c0_14 = arith.constant 0 : index
    %c0_15 = arith.constant 0 : index
    %7 = vector.load %arg3[%c0_14, %c0_15] : memref<1x4xf32, #tpu.memory_space<vmem>>, vector<1x4xf32>
    %8 = vector.shape_cast %7 : vector<1x4xf32> to vector<4xf32>
    %9 = vector.shape_cast %8 : vector<4xf32> to vector<1x1x4xf32>
    %10 = vector.broadcast %9 : vector<1x1x4xf32> to vector<16x16x4xf32>
    %11 = vector.extract_strided_slice %5 {offsets = [0, 0, 0], sizes = [16, 16, 4], strides = [1, 1, 1]} : vector<18x18x4xf32> to vector<16x16x4xf32>
    %12 = vector.extract_strided_slice %6 {offsets = [0, 0, 0], sizes = [1, 1, 4], strides = [1, 1, 1]} : vector<3x3x4xf32> to vector<1x1x4xf32>
    %13 = vector.shape_cast %12 : vector<1x1x4xf32> to vector<4xf32>
    %14 = vector.shape_cast %13 : vector<4xf32> to vector<1x1x4xf32>
    %15 = vector.broadcast %14 : vector<1x1x4xf32> to vector<16x16x4xf32>
    %16 = arith.mulf %11, %15 : vector<16x16x4xf32>
    %17 = arith.addf %10, %16 : vector<16x16x4xf32>
    %18 = vector.extract_strided_slice %5 {offsets = [0, 1, 0], sizes = [16, 16, 4], strides = [1, 1, 1]} : vector<18x18x4xf32> to vector<16x16x4xf32>
    %19 = vector.extract_strided_slice %6 {offsets = [0, 1, 0], sizes = [1, 1, 4], strides = [1, 1, 1]} : vector<3x3x4xf32> to vector<1x1x4xf32>
    %20 = vector.shape_cast %19 : vector<1x1x4xf32> to vector<4xf32>
    %21 = vector.shape_cast %20 : vector<4xf32> to vector<1x1x4xf32>
    %22 = vector.broadcast %21 : vector<1x1x4xf32> to vector<16x16x4xf32>
    %23 = arith.mulf %18, %22 : vector<16x16x4xf32>
    %24 = arith.addf %17, %23 : vector<16x16x4xf32>
    %25 = vector.extract_strided_slice %5 {offsets = [0, 2, 0], sizes = [16, 16, 4], strides = [1, 1, 1]} : vector<18x18x4xf32> to vector<16x16x4xf32>
    %26 = vector.extract_strided_slice %6 {offsets = [0, 2, 0], sizes = [1, 1, 4], strides = [1, 1, 1]} : vector<3x3x4xf32> to vector<1x1x4xf32>
    %27 = vector.shape_cast %26 : vector<1x1x4xf32> to vector<4xf32>
    %28 = vector.shape_cast %27 : vector<4xf32> to vector<1x1x4xf32>
    %29 = vector.broadcast %28 : vector<1x1x4xf32> to vector<16x16x4xf32>
    %30 = arith.mulf %25, %29 : vector<16x16x4xf32>
    %31 = arith.addf %24, %30 : vector<16x16x4xf32>
    %32 = vector.extract_strided_slice %5 {offsets = [1, 0, 0], sizes = [16, 16, 4], strides = [1, 1, 1]} : vector<18x18x4xf32> to vector<16x16x4xf32>
    %33 = vector.extract_strided_slice %6 {offsets = [1, 0, 0], sizes = [1, 1, 4], strides = [1, 1, 1]} : vector<3x3x4xf32> to vector<1x1x4xf32>
    %34 = vector.shape_cast %33 : vector<1x1x4xf32> to vector<4xf32>
    %35 = vector.shape_cast %34 : vector<4xf32> to vector<1x1x4xf32>
    %36 = vector.broadcast %35 : vector<1x1x4xf32> to vector<16x16x4xf32>
    %37 = arith.mulf %32, %36 : vector<16x16x4xf32>
    %38 = arith.addf %31, %37 : vector<16x16x4xf32>
    %39 = vector.extract_strided_slice %5 {offsets = [1, 1, 0], sizes = [16, 16, 4], strides = [1, 1, 1]} : vector<18x18x4xf32> to vector<16x16x4xf32>
    %40 = vector.extract_strided_slice %6 {offsets = [1, 1, 0], sizes = [1, 1, 4], strides = [1, 1, 1]} : vector<3x3x4xf32> to vector<1x1x4xf32>
    %41 = vector.shape_cast %40 : vector<1x1x4xf32> to vector<4xf32>
    %42 = vector.shape_cast %41 : vector<4xf32> to vector<1x1x4xf32>
    %43 = vector.broadcast %42 : vector<1x1x4xf32> to vector<16x16x4xf32>
    %44 = arith.mulf %39, %43 : vector<16x16x4xf32>
    %45 = arith.addf %38, %44 : vector<16x16x4xf32>
    %46 = vector.extract_strided_slice %5 {offsets = [1, 2, 0], sizes = [16, 16, 4], strides = [1, 1, 1]} : vector<18x18x4xf32> to vector<16x16x4xf32>
    %47 = vector.extract_strided_slice %6 {offsets = [1, 2, 0], sizes = [1, 1, 4], strides = [1, 1, 1]} : vector<3x3x4xf32> to vector<1x1x4xf32>
    %48 = vector.shape_cast %47 : vector<1x1x4xf32> to vector<4xf32>
    %49 = vector.shape_cast %48 : vector<4xf32> to vector<1x1x4xf32>
    %50 = vector.broadcast %49 : vector<1x1x4xf32> to vector<16x16x4xf32>
    %51 = arith.mulf %46, %50 : vector<16x16x4xf32>
    %52 = arith.addf %45, %51 : vector<16x16x4xf32>
    %53 = vector.extract_strided_slice %5 {offsets = [2, 0, 0], sizes = [16, 16, 4], strides = [1, 1, 1]} : vector<18x18x4xf32> to vector<16x16x4xf32>
    %54 = vector.extract_strided_slice %6 {offsets = [2, 0, 0], sizes = [1, 1, 4], strides = [1, 1, 1]} : vector<3x3x4xf32> to vector<1x1x4xf32>
    %55 = vector.shape_cast %54 : vector<1x1x4xf32> to vector<4xf32>
    %56 = vector.shape_cast %55 : vector<4xf32> to vector<1x1x4xf32>
    %57 = vector.broadcast %56 : vector<1x1x4xf32> to vector<16x16x4xf32>
    %58 = arith.mulf %53, %57 : vector<16x16x4xf32>
    %59 = arith.addf %52, %58 : vector<16x16x4xf32>
    %60 = vector.extract_strided_slice %5 {offsets = [2, 1, 0], sizes = [16, 16, 4], strides = [1, 1, 1]} : vector<18x18x4xf32> to vector<16x16x4xf32>
    %61 = vector.extract_strided_slice %6 {offsets = [2, 1, 0], sizes = [1, 1, 4], strides = [1, 1, 1]} : vector<3x3x4xf32> to vector<1x1x4xf32>
    %62 = vector.shape_cast %61 : vector<1x1x4xf32> to vector<4xf32>
    %63 = vector.shape_cast %62 : vector<4xf32> to vector<1x1x4xf32>
    %64 = vector.broadcast %63 : vector<1x1x4xf32> to vector<16x16x4xf32>
    %65 = arith.mulf %60, %64 : vector<16x16x4xf32>
    %66 = arith.addf %59, %65 : vector<16x16x4xf32>
    %67 = vector.extract_strided_slice %5 {offsets = [2, 2, 0], sizes = [16, 16, 4], strides = [1, 1, 1]} : vector<18x18x4xf32> to vector<16x16x4xf32>
    %68 = vector.extract_strided_slice %6 {offsets = [2, 2, 0], sizes = [1, 1, 4], strides = [1, 1, 1]} : vector<3x3x4xf32> to vector<1x1x4xf32>
    %69 = vector.shape_cast %68 : vector<1x1x4xf32> to vector<4xf32>
    %70 = vector.shape_cast %69 : vector<4xf32> to vector<1x1x4xf32>
    %71 = vector.broadcast %70 : vector<1x1x4xf32> to vector<16x16x4xf32>
    %72 = arith.mulf %67, %71 : vector<16x16x4xf32>
    %73 = arith.addf %66, %72 : vector<16x16x4xf32>
    %cst_16 = arith.constant 0.000000e+00 : f32
    %74 = vector.broadcast %cst_16 : f32 to vector<16x16x4xf32>
    %75 = arith.maximumf %73, %74 : vector<16x16x4xf32>
    %76 = vector.shape_cast %75 : vector<16x16x4xf32> to vector<256x4xf32>
    %c0_17 = arith.constant 0 : index
    %c0_18 = arith.constant 0 : index
    %77 = vector.load %arg4[%c0_17, %c0_18] : memref<8x4xf32, #tpu.memory_space<vmem>>, vector<8x4xf32>
    %cst_19 = arith.constant dense<0.000000e+00> : vector<8x256xf32>
    %78 = tpu.matmul %77, %76, %cst_19 {dimension_numbers = #tpu.dot_dimension_numbers<[1], [1], [0], [0], [0, 0, 1, 0], [], []>} : vector<8x4xf32>, vector<256x4xf32>, vector<8x256xf32> -> vector<8x256xf32>
    %c0_20 = arith.constant 0 : index
    %c0_21 = arith.constant 0 : index
    %c0_22 = arith.constant 0 : index
    %79 = vector.load %arg5[%c0_20, %c0_21, %c0_22] : memref<1x8x256xf32, #tpu.memory_space<vmem>>, vector<1x8x256xf32>
    %80 = vector.shape_cast %79 : vector<1x8x256xf32> to vector<8x256xf32>
    %81 = vector.shape_cast %78 : vector<8x256xf32> to vector<1x8x256xf32>
    tpu.vector_store %arg5[%c0_20, %c0_21, %c0_22], %81 {strides = array<i32>} : memref<1x8x256xf32, #tpu.memory_space<vmem>>, vector<1x8x256xf32>,
    return
  }
  func.func @transform_0(%arg0: i32) -> (i32, i32, i32, i32) {
    %c0_i32 = arith.constant 0 : i32
    %c0_i32_0 = arith.constant 0 : i32
    %c0_i32_1 = arith.constant 0 : i32
    %c0_i32_2 = arith.constant 0 : i32
    return %arg0, %c0_i32, %c0_i32_0, %c0_i32_1 : i32, i32, i32, i32
  }
  func.func @transform_1(%arg0: i32) -> (i32, i32, i32) {
    %c0_i32 = arith.constant 0 : i32
    %c0_i32_0 = arith.constant 0 : i32
    %c0_i32_1 = arith.constant 0 : i32
    %c0_i32_2 = arith.constant 0 : i32
    return %c0_i32, %c0_i32_0, %c0_i32_1 : i32, i32, i32
  }
  func.func @transform_2(%arg0: i32) -> (i32, i32) {
    %c0_i32 = arith.constant 0 : i32
    %c0_i32_0 = arith.constant 0 : i32
    %c0_i32_1 = arith.constant 0 : i32
    return %c0_i32, %c0_i32_0 : i32, i32
  }
  func.func @transform_3(%arg0: i32) -> (i32, i32) {
    %c0_i32 = arith.constant 0 : i32
    %c0_i32_0 = arith.constant 0 : i32
    %c0_i32_1 = arith.constant 0 : i32
    return %c0_i32, %c0_i32_0 : i32, i32
  }
  func.func @transform_4(%arg0: i32) -> (i32, i32, i32) {
    %c0_i32 = arith.constant 0 : i32
    %c0_i32_0 = arith.constant 0 : i32
    %c0_i32_1 = arith.constant 0 : i32
    return %arg0, %c0_i32, %c0_i32_0 : i32, i32, i32
  }
}

</mosaic_0001>

<llo_original>
// kernel: tpu_custom_call.1
$region0: #{tpu_custom_call.1}
  #allocation0 [shape = 'u32[]', space=smem, size = 0x4, offset = 0x4, fixed_abs, tag = 'smem constant byte address 0x4 - core index']
  #allocation1 [shape = 'u32[144,128]{1,0:T(1,128)}', space=vmem, size = 0x12000, scoped, tag = 'internal scratch']
  #allocation2 [shape = 'f32[18,18,4]{2,1,0:T(8,128)}', space=vmem, size = 0x36000, scoped, tag = 'scratch operand']
  %s0 = inlined_call_operand.vmem [shape: f32[2,16,16,4], index: 0, kind: input, shape index: {}]
  %s1 = inlined_call_operand.vmem [shape: f32[3,3,4], index: 1, kind: input, shape index: {}]
  %s2 = inlined_call_operand.vmem [shape: f32[1,4], index: 2, kind: input, shape index: {}]
  %s3 = inlined_call_operand.vmem [shape: f32[8,4], index: 3, kind: input, shape index: {}]
  %s4 = inlined_call_operand.hbm [shape: f32[2,8,256], index: 4, kind: output, shape index: {}]
  %s5 = sld [smem:[#allocation0]]
  $region49: #{tpu_custom_call.1} parent=0
    _
  %s7 = ssub.s32 1, %s5
  %s8 = scalar_select 0, %s7, %s5
  $region1: #{tpu_custom_call.1} parent=0
    #allocation3 [shape = 'u8[16384]{0}', space=vmem, size = 0x4000, scoped, tag = 'output window, operand 0']
    #allocation4 [shape = 's32[2]{0}', space=sflag, size = 0x8, scoped, tag = 'scoped memory for tpu_custom_call.1']
    %9 = vsyncpa [#allocation4], 0
    %s10 = scalar_lea.sflag [#allocation4], 1
    %11 = vsyncpa %s10, 0
    loop: start=0, step=1, limit=4
    $region2: #{tpu_custom_call.1} parent=1 // loop_pre_header
      _
    $region3: #{tpu_custom_call.1} parent=1 // loop_header
      %s13 = sphi 0, %s17
      %p14 = scmp.ge.s32.totalorder %s13, 4
      %s23 = sphi 0, %s25
      %s26 = sphi 0, %s23
      %s27 = sphi 0, %s26
      %s43 = sphi 0, %s27
      %s47 = sphi 0, %s47
      %s49 = sphi 0, %s47
      %s50 = sphi 0, %s49
      %s64 = sphi 0, %s50
      %s68 = sphi 0, %s68
      %s70 = sphi 0, %s68
      %s71 = sphi 0, %s70
      %s85 = sphi 0, %s71
      %s89 = sphi 0, %s89
      %s91 = sphi 0, %s89
      %s92 = sphi 0, %s91
      %s106 = sphi 0, %s92
      %s112 = sphi 0, %s114
      %s115 = sphi 0, %s112
      %s116 = sphi 0, %s115
      %s132 = sphi 0, %s116
    $region4: #{tpu_custom_call.1} parent=1 // loop_header_branch
      %16 = sbr.rel (%p14) target = $region8
    $region5: #{tpu_custom_call.1} parent=1 // loop_body
      %s18 = ssub.s32 %s13, 1
      %s19 = ssub.s32 %s13, 2
      %s20 = sadd.s32 %s13, 1
      %s21 = ssub.s32 %s13, %s20
      %p22 = scmp.eq.s32.totalorder %s21, 0
      %s24 = sadd.s32 %s23, 1
      %s25 = scalar_select %p22, %s23, %s24
      %p28 = pneg %p22
      %p29 = scmp.eq.s32.totalorder %s13, 1
      %p30 = por %p28, %p29
      %p31 = scmp.ne.s32.totalorder %s23, %s26
      %p32 = scmp.eq.s32.totalorder %s13, 0
      %p33 = por %p31, %p32
      %p34 = scmp.ne.s32.totalorder %s23, %s26
      %p35 = scmp.eq.s32.totalorder %s18, 1
      %p36 = por %p34, %p35
      %p37 = scmp.ne.s32.totalorder %s26, %s27
      %p38 = scmp.eq.s32.totalorder %s18, 0
      %p39 = por %p37, %p38
      %p40 = scmp.ne.s32.totalorder %s26, %s27
      %p41 = scmp.eq.s32.totalorder %s19, 1
      %p42 = por %p40, %p41
      %p44 = scmp.ne.s32.totalorder %s27, %s43
      %p45 = scmp.eq.s32.totalorder %s19, 0
      %p46 = por %p44, %p45
      %s48 = sadd.s32 %s47, 1
      %p51 = scmp.eq.s32.totalorder %s13, 1
      %p52 = scmp.ne.s32.totalorder %s47, %s49
      %p53 = scmp.eq.s32.totalorder %s13, 0
      %p54 = por %p52, %p53
      %p55 = scmp.ne.s32.totalorder %s47, %s49
      %p56 = scmp.eq.s32.totalorder %s18, 1
      %p57 = por %p55, %p56
      %p58 = scmp.ne.s32.totalorder %s49, %s50
      %p59 = scmp.eq.s32.totalorder %s18, 0
      %p60 = por %p58, %p59
      %p61 = scmp.ne.s32.totalorder %s49, %s50
      %p62 = scmp.eq.s32.totalorder %s19, 1
      %p63 = por %p61, %p62
      %p65 = scmp.ne.s32.totalorder %s50, %s64
      %p66 = scmp.eq.s32.totalorder %s19, 0
      %p67 = por %p65, %p66
      %s69 = sadd.s32 %s68, 1
      %p72 = scmp.eq.s32.totalorder %s13, 1
      %p73 = scmp.ne.s32.totalorder %s68, %s70
      %p74 = scmp.eq.s32.totalorder %s13, 0
      %p75 = por %p73, %p74
      %p76 = scmp.ne.s32.totalorder %s68, %s70
      %p77 = scmp.eq.s32.totalorder %s18, 1
      %p78 = por %p76, %p77
      %p79 = scmp.ne.s32.totalorder %s70, %s71
      %p80 = scmp.eq.s32.totalorder %s18, 0
      %p81 = por %p79, %p80
      %p82 = scmp.ne.s32.totalorder %s70, %s71
      %p83 = scmp.eq.s32.totalorder %s19, 1
      %p84 = por %p82, %p83
      %p86 = scmp.ne.s32.totalorder %s71, %s85
      %p87 = scmp.eq.s32.totalorder %s19, 0
      %p88 = por %p86, %p87
      %s90 = sadd.s32 %s89, 1
      %p93 = scmp.eq.s32.totalorder %s13, 1
      %p94 = scmp.ne.s32.totalorder %s89, %s91
      %p95 = scmp.eq.s32.totalorder %s13, 0
      %p96 = por %p94, %p95
      %p97 = scmp.ne.s32.totalorder %s89, %s91
      %p98 = scmp.eq.s32.totalorder %s18, 1
      %p99 = por %p97, %p98
      %p100 = scmp.ne.s32.totalorder %s91, %s92
      %p101 = scmp.eq.s32.totalorder %s18, 0
      %p102 = por %p100, %p101
      %p103 = scmp.ne.s32.totalorder %s91, %s92
      %p104 = scmp.eq.s32.totalorder %s19, 1
      %p105 = por %p103, %p104
      %p107 = scmp.ne.s32.totalorder %s92, %s106
      %p108 = scmp.eq.s32.totalorder %s19, 0
      %p109 = por %p107, %p108
      %s110 = ssub.s32 %s13, %s20
      %p111 = scmp.eq.s32.totalorder %s110, 0
      %s113 = sadd.s32 %s112, 1
      %s114 = scalar_select %p111, %s112, %s113
      %p117 = pneg %p111
      %p118 = scmp.eq.s32.totalorder %s13, 1
      %p119 = por %p117, %p118
      %p120 = scmp.ne.s32.totalorder %s112, %s115
      %p121 = scmp.eq.s32.totalorder %s13, 0
      %p122 = por %p120, %p121
      %p123 = scmp.ne.s32.totalorder %s112, %s115
      %p124 = scmp.eq.s32.totalorder %s18, 1
      %p125 = por %p123, %p124
      %p126 = scmp.ne.s32.totalorder %s115, %s116
      %p127 = scmp.eq.s32.totalorder %s18, 0
      %p128 = por %p126, %p127
      %p129 = scmp.ne.s32.totalorder %s115, %s116
      %p130 = scmp.eq.s32.totalorder %s19, 1
      %p131 = por %p129, %p130
      %p133 = scmp.ne.s32.totalorder %s116, %s132
      %p134 = scmp.eq.s32.totalorder %s19, 0
      %p135 = por %p133, %p134
      %p136 = scmp.le.s32.totalorder 1, %s13
      %p137 = scmp.lt.s32.totalorder %s13, 3
      %p138 = pnand %p136, %p137
      %p139 = pneg %p138
      // Predicated region
      $region9: #{tpu_custom_call.1} parent=5 // pred_check
        _
      $region10: #{tpu_custom_call.1} parent=5 // pred_check_branch
        %141 = sbr.rel (%p138) target = $region12
      $region11: #{tpu_custom_call.1} parent=5 // pred_region
        %s142 = ssub.s32 %s13, 1
        // Predicated region
        $region13: #{tpu_custom_call.1} parent=11 // pred_check
          %p143 = pneg %p60
        $region14: #{tpu_custom_call.1} parent=11 // pred_check_branch
          %145 = sbr.rel (%p143) target = $region16
        $region15: #{tpu_custom_call.1} parent=11 // pred_region
          _
        $region16: #{tpu_custom_call.1} parent=11 // pred_fallthru
          _
        // Predicated region
        $region17: #{tpu_custom_call.1} parent=11 // pred_check
          %p146 = pneg %p81
        $region18: #{tpu_custom_call.1} parent=11 // pred_check_branch
          %148 = sbr.rel (%p146) target = $region20
        $region19: #{tpu_custom_call.1} parent=11 // pred_region
          _
        $region20: #{tpu_custom_call.1} parent=11 // pred_fallthru
          _
        // Predicated region
        $region21: #{tpu_custom_call.1} parent=11 // pred_check
          %p149 = pneg %p102
        $region22: #{tpu_custom_call.1} parent=11 // pred_check_branch
          %151 = sbr.rel (%p149) target = $region24
        $region23: #{tpu_custom_call.1} parent=11 // pred_region
          _
        $region24: #{tpu_custom_call.1} parent=11 // pred_fallthru
          _
      $region12: #{tpu_custom_call.1} parent=5 // pred_fallthru
        _
      %p152 = scmp.lt.s32.totalorder %s13, 2
      // Predicated region
      $region25: #{tpu_custom_call.1} parent=5 // pred_check
        %p153 = pneg %p152
      $region26: #{tpu_custom_call.1} parent=5 // pred_check_branch
        %155 = sbr.rel (%p153) target = $region28
      $region27: #{tpu_custom_call.1} parent=5 // pred_region
        // Predicated region
        $region29: #{tpu_custom_call.1} parent=27 // pred_check
          %p156 = pneg %p33
        $region30: #{tpu_custom_call.1} parent=27 // pred_check_branch
          %158 = sbr.rel (%p156) target = $region32
        $region31: #{tpu_custom_call.1} parent=27 // pred_region
          %p159 = scmp.lt.s32.totalorder %s13, 1
          %s160 = scalar_select %p159, %s13, 1
          %s161 = smul.addr %s160, 32
          %s162 = smul.addr %s161, 8
          %s163 = scalar_lea.vmem %s0, %s162
        $region32: #{tpu_custom_call.1} parent=27 // pred_fallthru
          _
      $region28: #{tpu_custom_call.1} parent=5 // pred_fallthru
        _
      %p164 = scmp.le.s32.totalorder 1, %s13
      %p165 = scmp.lt.s32.totalorder %s13, 3
      %p166 = pnand %p164, %p165
      %p167 = pneg %p166
      // Predicated region
      $region33: #{tpu_custom_call.1} parent=5 // pred_check
        _
      $region34: #{tpu_custom_call.1} parent=5 // pred_check_branch
        %169 = sbr.rel (%p166) target = $region36
      $region35: #{tpu_custom_call.1} parent=5 // pred_region
        %s170 = ssub.s32 %s13, 1
        %p171 = scmp.lt.s32.totalorder %s18, 1
        %s172 = scalar_select %p171, %s18, 1
        %s173 = smul.addr %s172, 32
        %s174 = smul.addr %s173, 8
        %s175 = scalar_lea.vmem %s0, %s174
        %p176 = pneg %p39
        %p177 = pneg %p36
        %p178 = pneg %p60
        %p179 = pneg %p57
        %p180 = pneg %p81
        %p181 = pneg %p78
        %p182 = pneg %p102
        %p183 = pneg %p99
        %p184 = pneg %p128
        %p185 = pneg %p125
        %s186 = sand.u32 %s115, 1
        %s187 = scalar_lea.sflag [#allocation4], %s186
        %s188 = sand.u32 %s115, 1
        %s189 = smul.addr %s188, 16
        %s190 = scalar_lea.vmem [#allocation3], %s189
        %p191 = scmp.lt.s32.totalorder %s18, 1
        %s192 = scalar_select %p191, %s18, 1
        %s193 = smul.addr %s192, 32
        %s194 = smul.addr %s193, 8
        %s195 = scalar_lea.vmem %s0, %s194
        %vm196 = vcmask 31744
        %197 = vst.msk [vmem:[#allocation2] sm:$0xff] %vm196, 0.0
        %198 = vst.msk [vmem:[#allocation2 + $0x8] sm:$0xff] %vm196, 0.0
        %vm199 = vcmask 25600
        %200 = vst.msk [vmem:[#allocation2 + $0x10] sm:$0x3] %vm199, 0.0
        %201 = vst.msk [vmem:[#allocation2 + $0x18] sm:$0xff] %vm196, 0.0
        %202 = vst.msk [vmem:[#allocation2 + $0x20] sm:$0xff] %vm196, 0.0
        %203 = vst.msk [vmem:[#allocation2 + $0x28] sm:$0x3] %vm199, 0.0
        %204 = vst.msk [vmem:[#allocation2 + $0x30] sm:$0xff] %vm196, 0.0
        %205 = vst.msk [vmem:[#allocation2 + $0x38] sm:$0xff] %vm196, 0.0
        %206 = vst.msk [vmem:[#allocation2 + $0x40] sm:$0x3] %vm199, 0.0
        %207 = vst.msk [vmem:[#allocation2 + $0x48] sm:$0xff] %vm196, 0.0
        %208 = vst.msk [vmem:[#allocation2 + $0x50] sm:$0xff] %vm196, 0.0
        %209 = vst.msk [vmem:[#allocation2 + $0x58] sm:$0x3] %vm199, 0.0
        %210 = vst.msk [vmem:[#allocation2 + $0x60] sm:$0xff] %vm196, 0.0
        %211 = vst.msk [vmem:[#allocation2 + $0x68] sm:$0xff] %vm196, 0.0
        %212 = vst.msk [vmem:[#allocation2 + $0x70] sm:$0x3] %vm199, 0.0
        %213 = vst.msk [vmem:[#allocation2 + $0x78] sm:$0xff] %vm196, 0.0
        %214 = vst.msk [vmem:[#allocation2 + $0x80] sm:$0xff] %vm196, 0.0
        %215 = vst.msk [vmem:[#allocation2 + $0x88] sm:$0x3] %vm199, 0.0
        %216 = vst.msk [vmem:[#allocation2 + $0x90] sm:$0xff] %vm196, 0.0
        %217 = vst.msk [vmem:[#allocation2 + $0x98] sm:$0xff] %vm196, 0.0
        %218 = vst.msk [vmem:[#allocation2 + $0xa0] sm:$0x3] %vm199, 0.0
        %219 = vst.msk [vmem:[#allocation2 + $0xa8] sm:$0xff] %vm196, 0.0
        %220 = vst.msk [vmem:[#allocation2 + $0xb0] sm:$0xff] %vm196, 0.0
        %221 = vst.msk [vmem:[#allocation2 + $0xb8] sm:$0x3] %vm199, 0.0
        %222 = vst.msk [vmem:[#allocation2 + $0xc0] sm:$0xff] %vm196, 0.0
        %223 = vst.msk [vmem:[#allocation2 + $0xc8] sm:$0xff] %vm196, 0.0
        %224 = vst.msk [vmem:[#allocation2 + $0xd0] sm:$0x3] %vm199, 0.0
        %225 = vst.msk [vmem:[#allocation2 + $0xd8] sm:$0xff] %vm196, 0.0
        %226 = vst.msk [vmem:[#allocation2 + $0xe0] sm:$0xff] %vm196, 0.0
        %227 = vst.msk [vmem:[#allocation2 + $0xe8] sm:$0x3] %vm199, 0.0
        %228 = vst.msk [vmem:[#allocation2 + $0xf0] sm:$0xff] %vm196, 0.0
        %229 = vst.msk [vmem:[#allocation2 + $0xf8] sm:$0xff] %vm196, 0.0
        %230 = vst.msk [vmem:[#allocation2 + $0x100] sm:$0x3] %vm199, 0.0
        %231 = vst.msk [vmem:[#allocation2 + $0x108] sm:$0xff] %vm196, 0.0
        %232 = vst.msk [vmem:[#allocation2 + $0x110] sm:$0xff] %vm196, 0.0
        %233 = vst.msk [vmem:[#allocation2 + $0x118] sm:$0x3] %vm199, 0.0
        %234 = vst.msk [vmem:[#allocation2 + $0x120] sm:$0xff] %vm196, 0.0
        %235 = vst.msk [vmem:[#allocation2 + $0x128] sm:$0xff] %vm196, 0.0
        %236 = vst.msk [vmem:[#allocation2 + $0x130] sm:$0x3] %vm199, 0.0
        %237 = vst.msk [vmem:[#allocation2 + $0x138] sm:$0xff] %vm196, 0.0
        %238 = vst.msk [vmem:[#allocation2 + $0x140] sm:$0xff] %vm196, 0.0
        %239 = vst.msk [vmem:[#allocation2 + $0x148] sm:$0x3] %vm199, 0.0
        %240 = vst.msk [vmem:[#allocation2 + $0x150] sm:$0xff] %vm196, 0.0
        %241 = vst.msk [vmem:[#allocation2 + $0x158] sm:$0xff] %vm196, 0.0
        %242 = vst.msk [vmem:[#allocation2 + $0x160] sm:$0x3] %vm199, 0.0
        %243 = vst.msk [vmem:[#allocation2 + $0x168] sm:$0xff] %vm196, 0.0
        %244 = vst.msk [vmem:[#allocation2 + $0x170] sm:$0xff] %vm196, 0.0
        %245 = vst.msk [vmem:[#allocation2 + $0x178] sm:$0x3] %vm199, 0.0
        %246 = vst.msk [vmem:[#allocation2 + $0x180] sm:$0xff] %vm196, 0.0
        %247 = vst.msk [vmem:[#allocation2 + $0x188] sm:$0xff] %vm196, 0.0
        %248 = vst.msk [vmem:[#allocation2 + $0x190] sm:$0x3] %vm199, 0.0
        %249 = vst.msk [vmem:[#allocation2 + $0x198] sm:$0xff] %vm196, 0.0
        %250 = vst.msk [vmem:[#allocation2 + $0x1a0] sm:$0xff] %vm196, 0.0
        %251 = vst.msk [vmem:[#allocation2 + $0x1a8] sm:$0x3] %vm199, 0.0
        %v252 = vld [vmem:[%s195] sm:$0xff]
        %v253 = vld [vmem:[%s195 + $0x8] sm:$0xff]
        %v254 = vld [vmem:[%s195 + $0x10] sm:$0xff]
        %v255 = vld [vmem:[%s195 + $0x18] sm:$0xff]
        %v256 = vld [vmem:[%s195 + $0x20] sm:$0xff]
        %v257 = vld [vmem:[%s195 + $0x28] sm:$0xff]
        %v258 = vld [vmem:[%s195 + $0x30] sm:$0xff]
        %v259 = vld [vmem:[%s195 + $0x38] sm:$0xff]
        %v260 = vld [vmem:[%s195 + $0x40] sm:$0xff]
        %v261 = vld [vmem:[%s195 + $0x48] sm:$0xff]
        %v262 = vld [vmem:[%s195 + $0x50] sm:$0xff]
        %v263 = vld [vmem:[%s195 + $0x58] sm:$0xff]
        %v264 = vld [vmem:[%s195 + $0x60] sm:$0xff]
        %v265 = vld [vmem:[%s195 + $0x68] sm:$0xff]
        %v266 = vld [vmem:[%s195 + $0x70] sm:$0xff]
        %v267 = vld [vmem:[%s195 + $0x78] sm:$0xff]
        %v268 = vld [vmem:[%s195 + $0x80] sm:$0xff]
        %v269 = vld [vmem:[%s195 + $0x88] sm:$0xff]
        %v270 = vld [vmem:[%s195 + $0x90] sm:$0xff]
        %v271 = vld [vmem:[%s195 + $0x98] sm:$0xff]
        %v272 = vld [vmem:[%s195 + $0xa0] sm:$0xff]
        %v273 = vld [vmem:[%s195 + $0xa8] sm:$0xff]
        %v274 = vld [vmem:[%s195 + $0xb0] sm:$0xff]
        %v275 = vld [vmem:[%s195 + $0xb8] sm:$0xff]
        %v276 = vld [vmem:[%s195 + $0xc0] sm:$0xff]
        %v277 = vld [vmem:[%s195 + $0xc8] sm:$0xff]
        %v278 = vld [vmem:[%s195 + $0xd0] sm:$0xff]
        %v279 = vld [vmem:[%s195 + $0xd8] sm:$0xff]
        %v280 = vld [vmem:[%s195 + $0xe0] sm:$0xff]
        %v281 = vld [vmem:[%s195 + $0xe8] sm:$0xff]
        %v282 = vld [vmem:[%s195 + $0xf0] sm:$0xff]
        %v283 = vld [vmem:[%s195 + $0xf8] sm:$0xff]
        %s284 = scalar_lea.vmem [#allocation2], 24
        %285 = vst.msk [vmem:[%s284 + $0x1] sm:$0xff] %vm196, %v252
        %286 = vst.msk [vmem:[%s284 + $0x9] sm:$0xff] %vm196, %v253
        %287 = vst.msk [vmem:[%s284 + $0x19] sm:$0xff] %vm196, %v254
        %288 = vst.msk [vmem:[%s284 + $0x21] sm:$0xff] %vm196, %v255
        %289 = vst.msk [vmem:[%s284 + $0x31] sm:$0xff] %vm196, %v256
        %290 = vst.msk [vmem:[%s284 + $0x39] sm:$0xff] %vm196, %v257
        %291 = vst.msk [vmem:[%s284 + $0x49] sm:$0xff] %vm196, %v258
        %292 = vst.msk [vmem:[%s284 + $0x51] sm:$0xff] %vm196, %v259
        %293 = vst.msk [vmem:[%s284 + $0x61] sm:$0xff] %vm196, %v260
        %294 = vst.msk [vmem:[%s284 + $0x69] sm:$0xff] %vm196, %v261
        %295 = vst.msk [vmem:[%s284 + $0x79] sm:$0xff] %vm196, %v262
        %296 = vst.msk [vmem:[%s284 + $0x81] sm:$0xff] %vm196, %v263
        %297 = vst.msk [vmem:[%s284 + $0x91] sm:$0xff] %vm196, %v264
        %298 = vst.msk [vmem:[%s284 + $0x99] sm:$0xff] %vm196, %v265
        %299 = vst.msk [vmem:[%s284 + $0xa9] sm:$0xff] %vm196, %v266
        %300 = vst.msk [vmem:[%s284 + $0xb1] sm:$0xff] %vm196, %v267
        %301 = vst.msk [vmem:[%s284 + $0xc1] sm:$0xff] %vm196, %v268
        %302 = vst.msk [vmem:[%s284 + $0xc9] sm:$0xff] %vm196, %v269
        %303 = vst.msk [vmem:[%s284 + $0xd9] sm:$0xff] %vm196, %v270
        %304 = vst.msk [vmem:[%s284 + $0xe1] sm:$0xff] %vm196, %v271
        %305 = vst.msk [vmem:[%s284 + $0xf1] sm:$0xff] %vm196, %v272
        %306 = vst.msk [vmem:[%s284 + $0xf9] sm:$0xff] %vm196, %v273
        %307 = vst.msk [vmem:[%s284 + $0x109] sm:$0xff] %vm196, %v274
        %308 = vst.msk [vmem:[%s284 + $0x111] sm:$0xff] %vm196, %v275
        %309 = vst.msk [vmem:[%s284 + $0x121] sm:$0xff] %vm196, %v276
        %310 = vst.msk [vmem:[%s284 + $0x129] sm:$0xff] %vm196, %v277
        %311 = vst.msk [vmem:[%s284 + $0x139] sm:$0xff] %vm196, %v278
        %312 = vst.msk [vmem:[%s284 + $0x141] sm:$0xff] %vm196, %v279
        %313 = vst.msk [vmem:[%s284 + $0x151] sm:$0xff] %vm196, %v280
        %314 = vst.msk [vmem:[%s284 + $0x159] sm:$0xff] %vm196, %v281
        %315 = vst.msk [vmem:[%s284 + $0x169] sm:$0xff] %vm196, %v282
        %316 = vst.msk [vmem:[%s284 + $0x171] sm:$0xff] %vm196, %v283
        %v317 = vld [vmem:[#allocation2] sm:$0xff]
        %v318 = vld [vmem:[#allocation2 + $0x8] sm:$0xff]
        %v319 = vld [vmem:[#allocation2 + $0x10] sm:$0x3]
        %v320 = vld [vmem:[#allocation2 + $0x18] sm:$0xff]
        %v321 = vld [vmem:[#allocation2 + $0x20] sm:$0xff]
        %v322 = vld [vmem:[#allocation2 + $0x28] sm:$0x3]
        %v323 = vld [vmem:[#allocation2 + $0x30] sm:$0xff]
        %v324 = vld [vmem:[#allocation2 + $0x38] sm:$0xff]
        %v325 = vld [vmem:[#allocation2 + $0x40] sm:$0x3]
        %v326 = vld [vmem:[#allocation2 + $0x48] sm:$0xff]
        %v327 = vld [vmem:[#allocation2 + $0x50] sm:$0xff]
        %v328 = vld [vmem:[#allocation2 + $0x58] sm:$0x3]
        %v329 = vld [vmem:[#allocation2 + $0x60] sm:$0xff]
        %v330 = vld [vmem:[#allocation2 + $0x68] sm:$0xff]
        %v331 = vld [vmem:[#allocation2 + $0x70] sm:$0x3]
        %v332 = vld [vmem:[#allocation2 + $0x78] sm:$0xff]
        %v333 = vld [vmem:[#allocation2 + $0x80] sm:$0xff]
        %v334 = vld [vmem:[#allocation2 + $0x88] sm:$0x3]
        %v335 = vld [vmem:[#allocation2 + $0x90] sm:$0xff]
        %v336 = vld [vmem:[#allocation2 + $0x98] sm:$0xff]
        %v337 = vld [vmem:[#allocation2 + $0xa0] sm:$0x3]
        %v338 = vld [vmem:[#allocation2 + $0xa8] sm:$0xff]
        %v339 = vld [vmem:[#allocation2 + $0xb0] sm:$0xff]
        %v340 = vld [vmem:[#allocation2 + $0xb8] sm:$0x3]
        %v341 = vld [vmem:[#allocation2 + $0xc0] sm:$0xff]
        %v342 = vld [vmem:[#allocation2 + $0xc8] sm:$0xff]
        %v343 = vld [vmem:[#allocation2 + $0xd0] sm:$0x3]
        %v344 = vld [vmem:[#allocation2 + $0xd8] sm:$0xff]
        %v345 = vld [vmem:[#allocation2 + $0xe0] sm:$0xff]
        %v346 = vld [vmem:[#allocation2 + $0xe8] sm:$0x3]
        %v347 = vld [vmem:[#allocation2 + $0xf0] sm:$0xff]
        %v348 = vld [vmem:[#allocation2 + $0xf8] sm:$0xff]
        %v349 = vld [vmem:[#allocation2 + $0x100] sm:$0x3]
        %v350 = vld [vmem:[#allocation2 + $0x108] sm:$0xff]
        %v351 = vld [vmem:[#allocation2 + $0x110] sm:$0xff]
        %v352 = vld [vmem:[#allocation2 + $0x118] sm:$0x3]
        %v353 = vld [vmem:[#allocation2 + $0x120] sm:$0xff]
        %v354 = vld [vmem:[#allocation2 + $0x128] sm:$0xff]
        %v355 = vld [vmem:[#allocation2 + $0x130] sm:$0x3]
        %v356 = vld [vmem:[#allocation2 + $0x138] sm:$0xff]
        %v357 = vld [vmem:[#allocation2 + $0x140] sm:$0xff]
        %v358 = vld [vmem:[#allocation2 + $0x148] sm:$0x3]
        %v359 = vld [vmem:[#allocation2 + $0x150] sm:$0xff]
        %v360 = vld [vmem:[#allocation2 + $0x158] sm:$0xff]
        %v361 = vld [vmem:[#allocation2 + $0x160] sm:$0x3]
        %v362 = vld [vmem:[#allocation2 + $0x168] sm:$0xff]
        %v363 = vld [vmem:[#allocation2 + $0x170] sm:$0xff]
        %v364 = vld [vmem:[#allocation2 + $0x178] sm:$0x3]
        %v365 = vld [vmem:[#allocation2 + $0x180] sm:$0xff]
        %v366 = vld [vmem:[#allocation2 + $0x188] sm:$0xff]
        %v367 = vld [vmem:[#allocation2 + $0x190] sm:$0x3]
        %v368 = vld [vmem:[#allocation2 + $0x198] sm:$0xff]
        %v369 = vld [vmem:[#allocation2 + $0x1a0] sm:$0xff]
        %v370 = vld [vmem:[#allocation2 + $0x1a8] sm:$0x3]
        %v371 = vld [vmem:[%s1] sm:$0x7]
        %v372 = vld [vmem:[%s1 + $0x4] sm:$0x7]
        %v373 = vld [vmem:[%s1 + $0x8] sm:$0x7]
        %v374 = vld [vmem:[%s2] sm:$0x1]
        %v376 = vlaneseq
        %v377 = vshrl.u32 %v376, 7
        %v378 = vsub.s32 0, %v377
        %v379 = vrot.slane %v374, %v378
        %v381 = vlaneseq
        %v382 = vshrl.u32 %v381, 7
        %v383 = vsub.s32 0, %v382
        %v384 = vrot.slane %v371, %v383
        %v385 = vmul.f32 %v317, %v384
        %v386 = vmul.f32 %v318, %v384
        %v387 = vmul.f32 %v320, %v384
        %v388 = vmul.f32 %v321, %v384
        %v389 = vmul.f32 %v323, %v384
        %v390 = vmul.f32 %v324, %v384
        %v391 = vmul.f32 %v326, %v384
        %v392 = vmul.f32 %v327, %v384
        %v393 = vmul.f32 %v329, %v384
        %v394 = vmul.f32 %v330, %v384
        %v395 = vmul.f32 %v332, %v384
        %v396 = vmul.f32 %v333, %v384
        %v397 = vmul.f32 %v335, %v384
        %v398 = vmul.f32 %v336, %v384
        %v399 = vmul.f32 %v338, %v384
        %v400 = vmul.f32 %v339, %v384
        %v401 = vmul.f32 %v341, %v384
        %v402 = vmul.f32 %v342, %v384
        %v403 = vmul.f32 %v344, %v384
        %v404 = vmul.f32 %v345, %v384
        %v405 = vmul.f32 %v347, %v384
        %v406 = vmul.f32 %v348, %v384
        %v407 = vmul.f32 %v350, %v384
        %v408 = vmul.f32 %v351, %v384
        %v409 = vmul.f32 %v353, %v384
        %v410 = vmul.f32 %v354, %v384
        %v411 = vmul.f32 %v356, %v384
        %v412 = vmul.f32 %v357, %v384
        %v413 = vmul.f32 %v359, %v384
        %v414 = vmul.f32 %v360, %v384
        %v415 = vmul.f32 %v362, %v384
        %v416 = vmul.f32 %v363, %v384
        %v417 = vadd.f32 %v379, %v385
        %v418 = vadd.f32 %v379, %v386
        %v419 = vadd.f32 %v379, %v387
        %v420 = vadd.f32 %v379, %v388
        %v421 = vadd.f32 %v379, %v389
        %v422 = vadd.f32 %v379, %v390
        %v423 = vadd.f32 %v379, %v391
        %v424 = vadd.f32 %v379, %v392
        %v425 = vadd.f32 %v379, %v393
        %v426 = vadd.f32 %v379, %v394
        %v427 = vadd.f32 %v379, %v395
        %v428 = vadd.f32 %v379, %v396
        %v429 = vadd.f32 %v379, %v397
        %v430 = vadd.f32 %v379, %v398
        %v431 = vadd.f32 %v379, %v399
        %v432 = vadd.f32 %v379, %v400
        %v433 = vadd.f32 %v379, %v401
        %v434 = vadd.f32 %v379, %v402
        %v435 = vadd.f32 %v379, %v403
        %v436 = vadd.f32 %v379, %v404
        %v437 = vadd.f32 %v379, %v405
        %v438 = vadd.f32 %v379, %v406
        %v439 = vadd.f32 %v379, %v407
        %v440 = vadd.f32 %v379, %v408
        %v441 = vadd.f32 %v379, %v409
        %v442 = vadd.f32 %v379, %v410
        %v443 = vadd.f32 %v379, %v411
        %v444 = vadd.f32 %v379, %v412
        %v445 = vadd.f32 %v379, %v413
        %v446 = vadd.f32 %v379, %v414
        %v447 = vadd.f32 %v379, %v415
        %v448 = vadd.f32 %v379, %v416
        %v449 = vlaneseq
        %v450 = vshrl.u32 %v449, 7
        %v451 = vsub.s32 1, %v450
        %v452 = vrot.slane %v371, %v451
        %v453 = vmul.f32 %v317, %v452
        %v454 = vmul.f32 %v318, %v452
        %v455 = vmul.f32 %v319, %v452
        %v456 = vmul.f32 %v320, %v452
        %v457 = vmul.f32 %v321, %v452
        %v458 = vmul.f32 %v322, %v452
        %v459 = vmul.f32 %v323, %v452
        %v460 = vmul.f32 %v324, %v452
        %v461 = vmul.f32 %v325, %v452
        %v462 = vmul.f32 %v326, %v452
        %v463 = vmul.f32 %v327, %v452
        %v464 = vmul.f32 %v328, %v452
        %v465 = vmul.f32 %v329, %v452
        %v466 = vmul.f32 %v330, %v452
        %v467 = vmul.f32 %v331, %v452
        %v468 = vmul.f32 %v332, %v452
        %v469 = vmul.f32 %v333, %v452
        %v470 = vmul.f32 %v334, %v452
        %v471 = vmul.f32 %v335, %v452
        %v472 = vmul.f32 %v336, %v452
        %v473 = vmul.f32 %v337, %v452
        %v474 = vmul.f32 %v338, %v452
        %v475 = vmul.f32 %v339, %v452
        %v476 = vmul.f32 %v340, %v452
        %v477 = vmul.f32 %v341, %v452
        %v478 = vmul.f32 %v342, %v452
        %v479 = vmul.f32 %v343, %v452
        %v480 = vmul.f32 %v344, %v452
        %v481 = vmul.f32 %v345, %v452
        %v482 = vmul.f32 %v346, %v452
        %v483 = vmul.f32 %v347, %v452
        %v484 = vmul.f32 %v348, %v452
        %v485 = vmul.f32 %v349, %v452
        %v486 = vmul.f32 %v350, %v452
        %v487 = vmul.f32 %v351, %v452
        %v488 = vmul.f32 %v352, %v452
        %v489 = vmul.f32 %v353, %v452
        %v490 = vmul.f32 %v354, %v452
        %v491 = vmul.f32 %v355, %v452
        %v492 = vmul.f32 %v356, %v452
        %v493 = vmul.f32 %v357, %v452
        %v494 = vmul.f32 %v358, %v452
        %v495 = vmul.f32 %v359, %v452
        %v496 = vmul.f32 %v360, %v452
        %v497 = vmul.f32 %v361, %v452
        %v498 = vmul.f32 %v362, %v452
        %v499 = vmul.f32 %v363, %v452
        %v500 = vmul.f32 %v364, %v452
        %vm549 = vcmask 1046528
        %v550 = vrot.slane %v453, 1
        %v551 = vrot.slane %v454, 1
        %v552 = vsel %vm549, %v550, %v551
        %v553 = vrot.slane %v455, 1
        %v554 = vsel %vm549, %v551, %v553
        %v555 = vrot.slane %v456, 1
        %v556 = vrot.slane %v457, 1
        %v557 = vsel %vm549, %v555, %v556
        %v558 = vrot.slane %v458, 1
        %v559 = vsel %vm549, %v556, %v558
        %v560 = vrot.slane %v459, 1
        %v561 = vrot.slane %v460, 1
        %v562 = vsel %vm549, %v560, %v561
        %v563 = vrot.slane %v461, 1
        %v564 = vsel %vm549, %v561, %v563
        %v565 = vrot.slane %v462, 1
        %v566 = vrot.slane %v463, 1
        %v567 = vsel %vm549, %v565, %v566
        %v568 = vrot.slane %v464, 1
        %v569 = vsel %vm549, %v566, %v568
        %v570 = vrot.slane %v465, 1
        %v571 = vrot.slane %v466, 1
        %v572 = vsel %vm549, %v570, %v571
        %v573 = vrot.slane %v467, 1
        %v574 = vsel %vm549, %v571, %v573
        %v575 = vrot.slane %v468, 1
        %v576 = vrot.slane %v469, 1
        %v577 = vsel %vm549, %v575, %v576
        %v578 = vrot.slane %v470, 1
        %v579 = vsel %vm549, %v576, %v578
        %v580 = vrot.slane %v471, 1
        %v581 = vrot.slane %v472, 1
        %v582 = vsel %vm549, %v580, %v581
        %v583 = vrot.slane %v473, 1
        %v584 = vsel %vm549, %v581, %v583
        %v585 = vrot.slane %v474, 1
        %v586 = vrot.slane %v475, 1
        %v587 = vsel %vm549, %v585, %v586
        %v588 = vrot.slane %v476, 1
        %v589 = vsel %vm549, %v586, %v588
        %v590 = vrot.slane %v477, 1
        %v591 = vrot.slane %v478, 1
        %v592 = vsel %vm549, %v590, %v591
        %v593 = vrot.slane %v479, 1
        %v594 = vsel %vm549, %v591, %v593
        %v595 = vrot.slane %v480, 1
        %v596 = vrot.slane %v481, 1
        %v597 = vsel %vm549, %v595, %v596
        %v598 = vrot.slane %v482, 1
        %v599 = vsel %vm549, %v596, %v598
        %v600 = vrot.slane %v483, 1
        %v601 = vrot.slane %v484, 1
        %v602 = vsel %vm549, %v600, %v601
        %v603 = vrot.slane %v485, 1
        %v604 = vsel %vm549, %v601, %v603
        %v605 = vrot.slane %v486, 1
        %v606 = vrot.slane %v487, 1
        %v607 = vsel %vm549, %v605, %v606
        %v608 = vrot.slane %v488, 1
        %v609 = vsel %vm549, %v606, %v608
        %v610 = vrot.slane %v489, 1
        %v611 = vrot.slane %v490, 1
        %v612 = vsel %vm549, %v610, %v611
        %v613 = vrot.slane %v491, 1
        %v614 = vsel %vm549, %v611, %v613
        %v615 = vrot.slane %v492, 1
        %v616 = vrot.slane %v493, 1
        %v617 = vsel %vm549, %v615, %v616
        %v618 = vrot.slane %v494, 1
        %v619 = vsel %vm549, %v616, %v618
        %v620 = vrot.slane %v495, 1
        %v621 = vrot.slane %v496, 1
        %v622 = vsel %vm549, %v620, %v621
        %v623 = vrot.slane %v497, 1
        %v624 = vsel %vm549, %v621, %v623
        %v625 = vrot.slane %v498, 1
        %v626 = vrot.slane %v499, 1
        %v627 = vsel %vm549, %v625, %v626
        %v628 = vrot.slane %v500, 1
        %v629 = vsel %vm549, %v626, %v628
        %v662 = vadd.f32 %v417, %v552
        %v663 = vadd.f32 %v418, %v554
        %v664 = vadd.f32 %v419, %v557
        %v665 = vadd.f32 %v420, %v559
        %v666 = vadd.f32 %v421, %v562
        %v667 = vadd.f32 %v422, %v564
        %v668 = vadd.f32 %v423, %v567
        %v669 = vadd.f32 %v424, %v569
        %v670 = vadd.f32 %v425, %v572
        %v671 = vadd.f32 %v426, %v574
        %v672 = vadd.f32 %v427, %v577
        %v673 = vadd.f32 %v428, %v579
        %v674 = vadd.f32 %v429, %v582
        %v675 = vadd.f32 %v430, %v584
        %v676 = vadd.f32 %v431, %v587
        %v677 = vadd.f32 %v432, %v589
        %v678 = vadd.f32 %v433, %v592
        %v679 = vadd.f32 %v434, %v594
        %v680 = vadd.f32 %v435, %v597
        %v681 = vadd.f32 %v436, %v599
        %v682 = vadd.f32 %v437, %v602
        %v683 = vadd.f32 %v438, %v604
        %v684 = vadd.f32 %v439, %v607
        %v685 = vadd.f32 %v440, %v609
        %v686 = vadd.f32 %v441, %v612
        %v687 = vadd.f32 %v442, %v614
        %v688 = vadd.f32 %v443, %v617
        %v689 = vadd.f32 %v444, %v619
        %v690 = vadd.f32 %v445, %v622
        %v691 = vadd.f32 %v446, %v624
        %v692 = vadd.f32 %v447, %v627
        %v693 = vadd.f32 %v448, %v629
        %v694 = vlaneseq
        %v695 = vshrl.u32 %v694, 7
        %v696 = vsub.s32 2, %v695
        %v697 = vrot.slane %v371, %v696
        %v698 = vmul.f32 %v317, %v697
        %v699 = vmul.f32 %v318, %v697
        %v700 = vmul.f32 %v319, %v697
        %v701 = vmul.f32 %v320, %v697
        %v702 = vmul.f32 %v321, %v697
        %v703 = vmul.f32 %v322, %v697
        %v704 = vmul.f32 %v323, %v697
        %v705 = vmul.f32 %v324, %v697
        %v706 = vmul.f32 %v325, %v697
        %v707 = vmul.f32 %v326, %v697
        %v708 = vmul.f32 %v327, %v697
        %v709 = vmul.f32 %v328, %v697
        %v710 = vmul.f32 %v329, %v697
        %v711 = vmul.f32 %v330, %v697
        %v712 = vmul.f32 %v331, %v697
        %v713 = vmul.f32 %v332, %v697
        %v714 = vmul.f32 %v333, %v697
        %v715 = vmul.f32 %v334, %v697
        %v716 = vmul.f32 %v335, %v697
        %v717 = vmul.f32 %v336, %v697
        %v718 = vmul.f32 %v337, %v697
        %v719 = vmul.f32 %v338, %v697
        %v720 = vmul.f32 %v339, %v697
        %v721 = vmul.f32 %v340, %v697
        %v722 = vmul.f32 %v341, %v697
        %v723 = vmul.f32 %v342, %v697
        %v724 = vmul.f32 %v343, %v697
        %v725 = vmul.f32 %v344, %v697
        %v726 = vmul.f32 %v345, %v697
        %v727 = vmul.f32 %v346, %v697
        %v728 = vmul.f32 %v347, %v697
        %v729 = vmul.f32 %v348, %v697
        %v730 = vmul.f32 %v349, %v697
        %v731 = vmul.f32 %v350, %v697
        %v732 = vmul.f32 %v351, %v697
        %v733 = vmul.f32 %v352, %v697
        %v734 = vmul.f32 %v353, %v697
        %v735 = vmul.f32 %v354, %v697
        %v736 = vmul.f32 %v355, %v697
        %v737 = vmul.f32 %v356, %v697
        %v738 = vmul.f32 %v357, %v697
        %v739 = vmul.f32 %v358, %v697
        %v740 = vmul.f32 %v359, %v697
        %v741 = vmul.f32 %v360, %v697
        %v742 = vmul.f32 %v361, %v697
        %v743 = vmul.f32 %v362, %v697
        %v744 = vmul.f32 %v363, %v697
        %v745 = vmul.f32 %v364, %v697
        %vm794 = vcmask 1045504
        %v795 = vrot.slane %v698, 2
        %v796 = vrot.slane %v699, 2
        %v797 = vsel %vm794, %v795, %v796
        %v798 = vrot.slane %v700, 2
        %v799 = vsel %vm794, %v796, %v798
        %v800 = vrot.slane %v701, 2
        %v801 = vrot.slane %v702, 2
        %v802 = vsel %vm794, %v800, %v801
        %v803 = vrot.slane %v703, 2
        %v804 = vsel %vm794, %v801, %v803
        %v805 = vrot.slane %v704, 2
        %v806 = vrot.slane %v705, 2
        %v807 = vsel %vm794, %v805, %v806
        %v808 = vrot.slane %v706, 2
        %v809 = vsel %vm794, %v806, %v808
        %v810 = vrot.slane %v707, 2
        %v811 = vrot.slane %v708, 2
        %v812 = vsel %vm794, %v810, %v811
        %v813 = vrot.slane %v709, 2
        %v814 = vsel %vm794, %v811, %v813
        %v815 = vrot.slane %v710, 2
        %v816 = vrot.slane %v711, 2
        %v817 = vsel %vm794, %v815, %v816
        %v818 = vrot.slane %v712, 2
        %v819 = vsel %vm794, %v816, %v818
        %v820 = vrot.slane %v713, 2
        %v821 = vrot.slane %v714, 2
        %v822 = vsel %vm794, %v820, %v821
        %v823 = vrot.slane %v715, 2
        %v824 = vsel %vm794, %v821, %v823
        %v825 = vrot.slane %v716, 2
        %v826 = vrot.slane %v717, 2
        %v827 = vsel %vm794, %v825, %v826
        %v828 = vrot.slane %v718, 2
        %v829 = vsel %vm794, %v826, %v828
        %v830 = vrot.slane %v719, 2
        %v831 = vrot.slane %v720, 2
        %v832 = vsel %vm794, %v830, %v831
        %v833 = vrot.slane %v721, 2
        %v834 = vsel %vm794, %v831, %v833
        %v835 = vrot.slane %v722, 2
        %v836 = vrot.slane %v723, 2
        %v837 = vsel %vm794, %v835, %v836
        %v838 = vrot.slane %v724, 2
        %v839 = vsel %vm794, %v836, %v838
        %v840 = vrot.slane %v725, 2
        %v841 = vrot.slane %v726, 2
        %v842 = vsel %vm794, %v840, %v841
        %v843 = vrot.slane %v727, 2
        %v844 = vsel %vm794, %v841, %v843
        %v845 = vrot.slane %v728, 2
        %v846 = vrot.slane %v729, 2
        %v847 = vsel %vm794, %v845, %v846
        %v848 = vrot.slane %v730, 2
        %v849 = vsel %vm794, %v846, %v848
        %v850 = vrot.slane %v731, 2
        %v851 = vrot.slane %v732, 2
        %v852 = vsel %vm794, %v850, %v851
        %v853 = vrot.slane %v733, 2
        %v854 = vsel %vm794, %v851, %v853
        %v855 = vrot.slane %v734, 2
        %v856 = vrot.slane %v735, 2
        %v857 = vsel %vm794, %v855, %v856
        %v858 = vrot.slane %v736, 2
        %v859 = vsel %vm794, %v856, %v858
        %v860 = vrot.slane %v737, 2
        %v861 = vrot.slane %v738, 2
        %v862 = vsel %vm794, %v860, %v861
        %v863 = vrot.slane %v739, 2
        %v864 = vsel %vm794, %v861, %v863
        %v865 = vrot.slane %v740, 2
        %v866 = vrot.slane %v741, 2
        %v867 = vsel %vm794, %v865, %v866
        %v868 = vrot.slane %v742, 2
        %v869 = vsel %vm794, %v866, %v868
        %v870 = vrot.slane %v743, 2
        %v871 = vrot.slane %v744, 2
        %v872 = vsel %vm794, %v870, %v871
        %v873 = vrot.slane %v745, 2
        %v874 = vsel %vm794, %v871, %v873
        %v907 = vadd.f32 %v662, %v797
        %v908 = vadd.f32 %v663, %v799
        %v909 = vadd.f32 %v664, %v802
        %v910 = vadd.f32 %v665, %v804
        %v911 = vadd.f32 %v666, %v807
        %v912 = vadd.f32 %v667, %v809
        %v913 = vadd.f32 %v668, %v812
        %v914 = vadd.f32 %v669, %v814
        %v915 = vadd.f32 %v670, %v817
        %v916 = vadd.f32 %v671, %v819
        %v917 = vadd.f32 %v672, %v822
        %v918 = vadd.f32 %v673, %v824
        %v919 = vadd.f32 %v674, %v827
        %v920 = vadd.f32 %v675, %v829
        %v921 = vadd.f32 %v676, %v832
        %v922 = vadd.f32 %v677, %v834
        %v923 = vadd.f32 %v678, %v837
        %v924 = vadd.f32 %v679, %v839
        %v925 = vadd.f32 %v680, %v842
        %v926 = vadd.f32 %v681, %v844
        %v927 = vadd.f32 %v682, %v847
        %v928 = vadd.f32 %v683, %v849
        %v929 = vadd.f32 %v684, %v852
        %v930 = vadd.f32 %v685, %v854
        %v931 = vadd.f32 %v686, %v857
        %v932 = vadd.f32 %v687, %v859
        %v933 = vadd.f32 %v688, %v862
        %v934 = vadd.f32 %v689, %v864
        %v935 = vadd.f32 %v690, %v867
        %v936 = vadd.f32 %v691, %v869
        %v937 = vadd.f32 %v692, %v872
        %v938 = vadd.f32 %v693, %v874
        %v939 = vlaneseq
        %v940 = vshrl.u32 %v939, 7
        %v941 = vsub.s32 0, %v940
        %v942 = vrot.slane %v372, %v941
        %v943 = vmul.f32 %v320, %v942
        %v944 = vmul.f32 %v321, %v942
        %v945 = vmul.f32 %v323, %v942
        %v946 = vmul.f32 %v324, %v942
        %v947 = vmul.f32 %v326, %v942
        %v948 = vmul.f32 %v327, %v942
        %v949 = vmul.f32 %v329, %v942
        %v950 = vmul.f32 %v330, %v942
        %v951 = vmul.f32 %v332, %v942
        %v952 = vmul.f32 %v333, %v942
        %v953 = vmul.f32 %v335, %v942
        %v954 = vmul.f32 %v336, %v942
        %v955 = vmul.f32 %v338, %v942
        %v956 = vmul.f32 %v339, %v942
        %v957 = vmul.f32 %v341, %v942
        %v958 = vmul.f32 %v342, %v942
        %v959 = vmul.f32 %v344, %v942
        %v960 = vmul.f32 %v345, %v942
        %v961 = vmul.f32 %v347, %v942
        %v962 = vmul.f32 %v348, %v942
        %v963 = vmul.f32 %v350, %v942
        %v964 = vmul.f32 %v351, %v942
        %v965 = vmul.f32 %v353, %v942
        %v966 = vmul.f32 %v354, %v942
        %v967 = vmul.f32 %v356, %v942
        %v968 = vmul.f32 %v357, %v942
        %v969 = vmul.f32 %v359, %v942
        %v970 = vmul.f32 %v360, %v942
        %v971 = vmul.f32 %v362, %v942
        %v972 = vmul.f32 %v363, %v942
        %v973 = vmul.f32 %v365, %v942
        %v974 = vmul.f32 %v366, %v942
        %v975 = vadd.f32 %v907, %v943
        %v976 = vadd.f32 %v908, %v944
        %v977 = vadd.f32 %v909, %v945
        %v978 = vadd.f32 %v910, %v946
        %v979 = vadd.f32 %v911, %v947
        %v980 = vadd.f32 %v912, %v948
        %v981 = vadd.f32 %v913, %v949
        %v982 = vadd.f32 %v914, %v950
        %v983 = vadd.f32 %v915, %v951
        %v984 = vadd.f32 %v916, %v952
        %v985 = vadd.f32 %v917, %v953
        %v986 = vadd.f32 %v918, %v954
        %v987 = vadd.f32 %v919, %v955
        %v988 = vadd.f32 %v920, %v956
        %v989 = vadd.f32 %v921, %v957
        %v990 = vadd.f32 %v922, %v958
        %v991 = vadd.f32 %v923, %v959
        %v992 = vadd.f32 %v924, %v960
        %v993 = vadd.f32 %v925, %v961
        %v994 = vadd.f32 %v926, %v962
        %v995 = vadd.f32 %v927, %v963
        %v996 = vadd.f32 %v928, %v964
        %v997 = vadd.f32 %v929, %v965
        %v998 = vadd.f32 %v930, %v966
        %v999 = vadd.f32 %v931, %v967
        %v1000 = vadd.f32 %v932, %v968
        %v1001 = vadd.f32 %v933, %v969
        %v1002 = vadd.f32 %v934, %v970
        %v1003 = vadd.f32 %v935, %v971
        %v1004 = vadd.f32 %v936, %v972
        %v1005 = vadd.f32 %v937, %v973
        %v1006 = vadd.f32 %v938, %v974
        %v1007 = vlaneseq
        %v1008 = vshrl.u32 %v1007, 7
        %v1009 = vsub.s32 1, %v1008
        %v1010 = vrot.slane %v372, %v1009
        %v1011 = vmul.f32 %v320, %v1010
        %v1012 = vmul.f32 %v321, %v1010
        %v1013 = vmul.f32 %v322, %v1010
        %v1014 = vmul.f32 %v323, %v1010
        %v1015 = vmul.f32 %v324, %v1010
        %v1016 = vmul.f32 %v325, %v1010
        %v1017 = vmul.f32 %v326, %v1010
        %v1018 = vmul.f32 %v327, %v1010
        %v1019 = vmul.f32 %v328, %v1010
        %v1020 = vmul.f32 %v329, %v1010
        %v1021 = vmul.f32 %v330, %v1010
        %v1022 = vmul.f32 %v331, %v1010
        %v1023 = vmul.f32 %v332, %v1010
        %v1024 = vmul.f32 %v333, %v1010
        %v1025 = vmul.f32 %v334, %v1010
        %v1026 = vmul.f32 %v335, %v1010
        %v1027 = vmul.f32 %v336, %v1010
        %v1028 = vmul.f32 %v337, %v1010
        %v1029 = vmul.f32 %v338, %v1010
        %v1030 = vmul.f32 %v339, %v1010
        %v1031 = vmul.f32 %v340, %v1010
        %v1032 = vmul.f32 %v341, %v1010
        %v1033 = vmul.f32 %v342, %v1010
        %v1034 = vmul.f32 %v343, %v1010
        %v1035 = vmul.f32 %v344, %v1010
        %v1036 = vmul.f32 %v345, %v1010
        %v1037 = vmul.f32 %v346, %v1010
        %v1038 = vmul.f32 %v347, %v1010
        %v1039 = vmul.f32 %v348, %v1010
        %v1040 = vmul.f32 %v349, %v1010
        %v1041 = vmul.f32 %v350, %v1010
        %v1042 = vmul.f32 %v351, %v1010
        %v1043 = vmul.f32 %v352, %v1010
        %v1044 = vmul.f32 %v353, %v1010
        %v1045 = vmul.f32 %v354, %v1010
        %v1046 = vmul.f32 %v355, %v1010
        %v1047 = vmul.f32 %v356, %v1010
        %v1048 = vmul.f32 %v357, %v1010
        %v1049 = vmul.f32 %v358, %v1010
        %v1050 = vmul.f32 %v359, %v1010
        %v1051 = vmul.f32 %v360, %v1010
        %v1052 = vmul.f32 %v361, %v1010
        %v1053 = vmul.f32 %v362, %v1010
        %v1054 = vmul.f32 %v363, %v1010
        %v1055 = vmul.f32 %v364, %v1010
        %v1056 = vmul.f32 %v365, %v1010
        %v1057 = vmul.f32 %v366, %v1010
        %v1058 = vmul.f32 %v367, %v1010
        %v1107 = vrot.slane %v1011, 1
        %v1108 = vrot.slane %v1012, 1
        %v1109 = vsel %vm549, %v1107, %v1108
        %v1110 = vrot.slane %v1013, 1
        %v1111 = vsel %vm549, %v1108, %v1110
        %v1112 = vrot.slane %v1014, 1
        %v1113 = vrot.slane %v1015, 1
        %v1114 = vsel %vm549, %v1112, %v1113
        %v1115 = vrot.slane %v1016, 1
        %v1116 = vsel %vm549, %v1113, %v1115
        %v1117 = vrot.slane %v1017, 1
        %v1118 = vrot.slane %v1018, 1
        %v1119 = vsel %vm549, %v1117, %v1118
        %v1120 = vrot.slane %v1019, 1
        %v1121 = vsel %vm549, %v1118, %v1120
        %v1122 = vrot.slane %v1020, 1
        %v1123 = vrot.slane %v1021, 1
        %v1124 = vsel %vm549, %v1122, %v1123
        %v1125 = vrot.slane %v1022, 1
        %v1126 = vsel %vm549, %v1123, %v1125
        %v1127 = vrot.slane %v1023, 1
        %v1128 = vrot.slane %v1024, 1
        %v1129 = vsel %vm549, %v1127, %v1128
        %v1130 = vrot.slane %v1025, 1
        %v1131 = vsel %vm549, %v1128, %v1130
        %v1132 = vrot.slane %v1026, 1
        %v1133 = vrot.slane %v1027, 1
        %v1134 = vsel %vm549, %v1132, %v1133
        %v1135 = vrot.slane %v1028, 1
        %v1136 = vsel %vm549, %v1133, %v1135
        %v1137 = vrot.slane %v1029, 1
        %v1138 = vrot.slane %v1030, 1
        %v1139 = vsel %vm549, %v1137, %v1138
        %v1140 = vrot.slane %v1031, 1
        %v1141 = vsel %vm549, %v1138, %v1140
        %v1142 = vrot.slane %v1032, 1
        %v1143 = vrot.slane %v1033, 1
        %v1144 = vsel %vm549, %v1142, %v1143
        %v1145 = vrot.slane %v1034, 1
        %v1146 = vsel %vm549, %v1143, %v1145
        %v1147 = vrot.slane %v1035, 1
        %v1148 = vrot.slane %v1036, 1
        %v1149 = vsel %vm549, %v1147, %v1148
        %v1150 = vrot.slane %v1037, 1
        %v1151 = vsel %vm549, %v1148, %v1150
        %v1152 = vrot.slane %v1038, 1
        %v1153 = vrot.slane %v1039, 1
        %v1154 = vsel %vm549, %v1152, %v1153
        %v1155 = vrot.slane %v1040, 1
        %v1156 = vsel %vm549, %v1153, %v1155
        %v1157 = vrot.slane %v1041, 1
        %v1158 = vrot.slane %v1042, 1
        %v1159 = vsel %vm549, %v1157, %v1158
        %v1160 = vrot.slane %v1043, 1
        %v1161 = vsel %vm549, %v1158, %v1160
        %v1162 = vrot.slane %v1044, 1
        %v1163 = vrot.slane %v1045, 1
        %v1164 = vsel %vm549, %v1162, %v1163
        %v1165 = vrot.slane %v1046, 1
        %v1166 = vsel %vm549, %v1163, %v1165
        %v1167 = vrot.slane %v1047, 1
        %v1168 = vrot.slane %v1048, 1
        %v1169 = vsel %vm549, %v1167, %v1168
        %v1170 = vrot.slane %v1049, 1
        %v1171 = vsel %vm549, %v1168, %v1170
        %v1172 = vrot.slane %v1050, 1
        %v1173 = vrot.slane %v1051, 1
        %v1174 = vsel %vm549, %v1172, %v1173
        %v1175 = vrot.slane %v1052, 1
        %v1176 = vsel %vm549, %v1173, %v1175
        %v1177 = vrot.slane %v1053, 1
        %v1178 = vrot.slane %v1054, 1
        %v1179 = vsel %vm549, %v1177, %v1178
        %v1180 = vrot.slane %v1055, 1
        %v1181 = vsel %vm549, %v1178, %v1180
        %v1182 = vrot.slane %v1056, 1
        %v1183 = vrot.slane %v1057, 1
        %v1184 = vsel %vm549, %v1182, %v1183
        %v1185 = vrot.slane %v1058, 1
        %v1186 = vsel %vm549, %v1183, %v1185
        %v1219 = vadd.f32 %v975, %v1109
        %v1220 = vadd.f32 %v976, %v1111
        %v1221 = vadd.f32 %v977, %v1114
        %v1222 = vadd.f32 %v978, %v1116
        %v1223 = vadd.f32 %v979, %v1119
        %v1224 = vadd.f32 %v980, %v1121
        %v1225 = vadd.f32 %v981, %v1124
        %v1226 = vadd.f32 %v982, %v1126
        %v1227 = vadd.f32 %v983, %v1129
        %v1228 = vadd.f32 %v984, %v1131
        %v1229 = vadd.f32 %v985, %v1134
        %v1230 = vadd.f32 %v986, %v1136
        %v1231 = vadd.f32 %v987, %v1139
        %v1232 = vadd.f32 %v988, %v1141
        %v1233 = vadd.f32 %v989, %v1144
        %v1234 = vadd.f32 %v990, %v1146
        %v1235 = vadd.f32 %v991, %v1149
        %v1236 = vadd.f32 %v992, %v1151
        %v1237 = vadd.f32 %v993, %v1154
        %v1238 = vadd.f32 %v994, %v1156
        %v1239 = vadd.f32 %v995, %v1159
        %v1240 = vadd.f32 %v996, %v1161
        %v1241 = vadd.f32 %v997, %v1164
        %v1242 = vadd.f32 %v998, %v1166
        %v1243 = vadd.f32 %v999, %v1169
        %v1244 = vadd.f32 %v1000, %v1171
        %v1245 = vadd.f32 %v1001, %v1174
        %v1246 = vadd.f32 %v1002, %v1176
        %v1247 = vadd.f32 %v1003, %v1179
        %v1248 = vadd.f32 %v1004, %v1181
        %v1249 = vadd.f32 %v1005, %v1184
        %v1250 = vadd.f32 %v1006, %v1186
        %v1251 = vlaneseq
        %v1252 = vshrl.u32 %v1251, 7
        %v1253 = vsub.s32 2, %v1252
        %v1254 = vrot.slane %v372, %v1253
        %v1255 = vmul.f32 %v320, %v1254
        %v1256 = vmul.f32 %v321, %v1254
        %v1257 = vmul.f32 %v322, %v1254
        %v1258 = vmul.f32 %v323, %v1254
        %v1259 = vmul.f32 %v324, %v1254
        %v1260 = vmul.f32 %v325, %v1254
        %v1261 = vmul.f32 %v326, %v1254
        %v1262 = vmul.f32 %v327, %v1254
        %v1263 = vmul.f32 %v328, %v1254
        %v1264 = vmul.f32 %v329, %v1254
        %v1265 = vmul.f32 %v330, %v1254
        %v1266 = vmul.f32 %v331, %v1254
        %v1267 = vmul.f32 %v332, %v1254
        %v1268 = vmul.f32 %v333, %v1254
        %v1269 = vmul.f32 %v334, %v1254
        %v1270 = vmul.f32 %v335, %v1254
        %v1271 = vmul.f32 %v336, %v1254
        %v1272 = vmul.f32 %v337, %v1254
        %v1273 = vmul.f32 %v338, %v1254
        %v1274 = vmul.f32 %v339, %v1254
        %v1275 = vmul.f32 %v340, %v1254
        %v1276 = vmul.f32 %v341, %v1254
        %v1277 = vmul.f32 %v342, %v1254
        %v1278 = vmul.f32 %v343, %v1254
        %v1279 = vmul.f32 %v344, %v1254
        %v1280 = vmul.f32 %v345, %v1254
        %v1281 = vmul.f32 %v346, %v1254
        %v1282 = vmul.f32 %v347, %v1254
        %v1283 = vmul.f32 %v348, %v1254
        %v1284 = vmul.f32 %v349, %v1254
        %v1285 = vmul.f32 %v350, %v1254
        %v1286 = vmul.f32 %v351, %v1254
        %v1287 = vmul.f32 %v352, %v1254
        %v1288 = vmul.f32 %v353, %v1254
        %v1289 = vmul.f32 %v354, %v1254
        %v1290 = vmul.f32 %v355, %v1254
        %v1291 = vmul.f32 %v356, %v1254
        %v1292 = vmul.f32 %v357, %v1254
        %v1293 = vmul.f32 %v358, %v1254
        %v1294 = vmul.f32 %v359, %v1254
        %v1295 = vmul.f32 %v360, %v1254
        %v1296 = vmul.f32 %v361, %v1254
        %v1297 = vmul.f32 %v362, %v1254
        %v1298 = vmul.f32 %v363, %v1254
        %v1299 = vmul.f32 %v364, %v1254
        %v1300 = vmul.f32 %v365, %v1254
        %v1301 = vmul.f32 %v366, %v1254
        %v1302 = vmul.f32 %v367, %v1254
        %v1351 = vrot.slane %v1255, 2
        %v1352 = vrot.slane %v1256, 2
        %v1353 = vsel %vm794, %v1351, %v1352
        %v1354 = vrot.slane %v1257, 2
        %v1355 = vsel %vm794, %v1352, %v1354
        %v1356 = vrot.slane %v1258, 2
        %v1357 = vrot.slane %v1259, 2
        %v1358 = vsel %vm794, %v1356, %v1357
        %v1359 = vrot.slane %v1260, 2
        %v1360 = vsel %vm794, %v1357, %v1359
        %v1361 = vrot.slane %v1261, 2
        %v1362 = vrot.slane %v1262, 2
        %v1363 = vsel %vm794, %v1361, %v1362
        %v1364 = vrot.slane %v1263, 2
        %v1365 = vsel %vm794, %v1362, %v1364
        %v1366 = vrot.slane %v1264, 2
        %v1367 = vrot.slane %v1265, 2
        %v1368 = vsel %vm794, %v1366, %v1367
        %v1369 = vrot.slane %v1266, 2
        %v1370 = vsel %vm794, %v1367, %v1369
        %v1371 = vrot.slane %v1267, 2
        %v1372 = vrot.slane %v1268, 2
        %v1373 = vsel %vm794, %v1371, %v1372
        %v1374 = vrot.slane %v1269, 2
        %v1375 = vsel %vm794, %v1372, %v1374
        %v1376 = vrot.slane %v1270, 2
        %v1377 = vrot.slane %v1271, 2
        %v1378 = vsel %vm794, %v1376, %v1377
        %v1379 = vrot.slane %v1272, 2
        %v1380 = vsel %vm794, %v1377, %v1379
        %v1381 = vrot.slane %v1273, 2
        %v1382 = vrot.slane %v1274, 2
        %v1383 = vsel %vm794, %v1381, %v1382
        %v1384 = vrot.slane %v1275, 2
        %v1385 = vsel %vm794, %v1382, %v1384
        %v1386 = vrot.slane %v1276, 2
        %v1387 = vrot.slane %v1277, 2
        %v1388 = vsel %vm794, %v1386, %v1387
        %v1389 = vrot.slane %v1278, 2
        %v1390 = vsel %vm794, %v1387, %v1389
        %v1391 = vrot.slane %v1279, 2
        %v1392 = vrot.slane %v1280, 2
        %v1393 = vsel %vm794, %v1391, %v1392
        %v1394 = vrot.slane %v1281, 2
        %v1395 = vsel %vm794, %v1392, %v1394
        %v1396 = vrot.slane %v1282, 2
        %v1397 = vrot.slane %v1283, 2
        %v1398 = vsel %vm794, %v1396, %v1397
        %v1399 = vrot.slane %v1284, 2
        %v1400 = vsel %vm794, %v1397, %v1399
        %v1401 = vrot.slane %v1285, 2
        %v1402 = vrot.slane %v1286, 2
        %v1403 = vsel %vm794, %v1401, %v1402
        %v1404 = vrot.slane %v1287, 2
        %v1405 = vsel %vm794, %v1402, %v1404
        %v1406 = vrot.slane %v1288, 2
        %v1407 = vrot.slane %v1289, 2
        %v1408 = vsel %vm794, %v1406, %v1407
        %v1409 = vrot.slane %v1290, 2
        %v1410 = vsel %vm794, %v1407, %v1409
        %v1411 = vrot.slane %v1291, 2
        %v1412 = vrot.slane %v1292, 2
        %v1413 = vsel %vm794, %v1411, %v1412
        %v1414 = vrot.slane %v1293, 2
        %v1415 = vsel %vm794, %v1412, %v1414
        %v1416 = vrot.slane %v1294, 2
        %v1417 = vrot.slane %v1295, 2
        %v1418 = vsel %vm794, %v1416, %v1417
        %v1419 = vrot.slane %v1296, 2
        %v1420 = vsel %vm794, %v1417, %v1419
        %v1421 = vrot.slane %v1297, 2
        %v1422 = vrot.slane %v1298, 2
        %v1423 = vsel %vm794, %v1421, %v1422
        %v1424 = vrot.slane %v1299, 2
        %v1425 = vsel %vm794, %v1422, %v1424
        %v1426 = vrot.slane %v1300, 2
        %v1427 = vrot.slane %v1301, 2
        %v1428 = vsel %vm794, %v1426, %v1427
        %v1429 = vrot.slane %v1302, 2
        %v1430 = vsel %vm794, %v1427, %v1429
        %v1463 = vadd.f32 %v1219, %v1353
        %v1464 = vadd.f32 %v1220, %v1355
        %v1465 = vadd.f32 %v1221, %v1358
        %v1466 = vadd.f32 %v1222, %v1360
        %v1467 = vadd.f32 %v1223, %v1363
        %v1468 = vadd.f32 %v1224, %v1365
        %v1469 = vadd.f32 %v1225, %v1368
        %v1470 = vadd.f32 %v1226, %v1370
        %v1471 = vadd.f32 %v1227, %v1373
        %v1472 = vadd.f32 %v1228, %v1375
        %v1473 = vadd.f32 %v1229, %v1378
        %v1474 = vadd.f32 %v1230, %v1380
        %v1475 = vadd.f32 %v1231, %v1383
        %v1476 = vadd.f32 %v1232, %v1385
        %v1477 = vadd.f32 %v1233, %v1388
        %v1478 = vadd.f32 %v1234, %v1390
        %v1479 = vadd.f32 %v1235, %v1393
        %v1480 = vadd.f32 %v1236, %v1395
        %v1481 = vadd.f32 %v1237, %v1398
        %v1482 = vadd.f32 %v1238, %v1400
        %v1483 = vadd.f32 %v1239, %v1403
        %v1484 = vadd.f32 %v1240, %v1405
        %v1485 = vadd.f32 %v1241, %v1408
        %v1486 = vadd.f32 %v1242, %v1410
        %v1487 = vadd.f32 %v1243, %v1413
        %v1488 = vadd.f32 %v1244, %v1415
        %v1489 = vadd.f32 %v1245, %v1418
        %v1490 = vadd.f32 %v1246, %v1420
        %v1491 = vadd.f32 %v1247, %v1423
        %v1492 = vadd.f32 %v1248, %v1425
        %v1493 = vadd.f32 %v1249, %v1428
        %v1494 = vadd.f32 %v1250, %v1430
        %v1495 = vlaneseq
        %v1496 = vshrl.u32 %v1495, 7
        %v1497 = vsub.s32 0, %v1496
        %v1498 = vrot.slane %v373, %v1497
        %v1499 = vmul.f32 %v323, %v1498
        %v1500 = vmul.f32 %v324, %v1498
        %v1501 = vmul.f32 %v326, %v1498
        %v1502 = vmul.f32 %v327, %v1498
        %v1503 = vmul.f32 %v329, %v1498
        %v1504 = vmul.f32 %v330, %v1498
        %v1505 = vmul.f32 %v332, %v1498
        %v1506 = vmul.f32 %v333, %v1498
        %v1507 = vmul.f32 %v335, %v1498
        %v1508 = vmul.f32 %v336, %v1498
        %v1509 = vmul.f32 %v338, %v1498
        %v1510 = vmul.f32 %v339, %v1498
        %v1511 = vmul.f32 %v341, %v1498
        %v1512 = vmul.f32 %v342, %v1498
        %v1513 = vmul.f32 %v344, %v1498
        %v1514 = vmul.f32 %v345, %v1498
        %v1515 = vmul.f32 %v347, %v1498
        %v1516 = vmul.f32 %v348, %v1498
        %v1517 = vmul.f32 %v350, %v1498
        %v1518 = vmul.f32 %v351, %v1498
        %v1519 = vmul.f32 %v353, %v1498
        %v1520 = vmul.f32 %v354, %v1498
        %v1521 = vmul.f32 %v356, %v1498
        %v1522 = vmul.f32 %v357, %v1498
        %v1523 = vmul.f32 %v359, %v1498
        %v1524 = vmul.f32 %v360, %v1498
        %v1525 = vmul.f32 %v362, %v1498
        %v1526 = vmul.f32 %v363, %v1498
        %v1527 = vmul.f32 %v365, %v1498
        %v1528 = vmul.f32 %v366, %v1498
        %v1529 = vmul.f32 %v368, %v1498
        %v1530 = vmul.f32 %v369, %v1498
        %v1531 = vadd.f32 %v1463, %v1499
        %v1532 = vadd.f32 %v1464, %v1500
        %v1533 = vadd.f32 %v1465, %v1501
        %v1534 = vadd.f32 %v1466, %v1502
        %v1535 = vadd.f32 %v1467, %v1503
        %v1536 = vadd.f32 %v1468, %v1504
        %v1537 = vadd.f32 %v1469, %v1505
        %v1538 = vadd.f32 %v1470, %v1506
        %v1539 = vadd.f32 %v1471, %v1507
        %v1540 = vadd.f32 %v1472, %v1508
        %v1541 = vadd.f32 %v1473, %v1509
        %v1542 = vadd.f32 %v1474, %v1510
        %v1543 = vadd.f32 %v1475, %v1511
        %v1544 = vadd.f32 %v1476, %v1512
        %v1545 = vadd.f32 %v1477, %v1513
        %v1546 = vadd.f32 %v1478, %v1514
        %v1547 = vadd.f32 %v1479, %v1515
        %v1548 = vadd.f32 %v1480, %v1516
        %v1549 = vadd.f32 %v1481, %v1517
        %v1550 = vadd.f32 %v1482, %v1518
        %v1551 = vadd.f32 %v1483, %v1519
        %v1552 = vadd.f32 %v1484, %v1520
        %v1553 = vadd.f32 %v1485, %v1521
        %v1554 = vadd.f32 %v1486, %v1522
        %v1555 = vadd.f32 %v1487, %v1523
        %v1556 = vadd.f32 %v1488, %v1524
        %v1557 = vadd.f32 %v1489, %v1525
        %v1558 = vadd.f32 %v1490, %v1526
        %v1559 = vadd.f32 %v1491, %v1527
        %v1560 = vadd.f32 %v1492, %v1528
        %v1561 = vadd.f32 %v1493, %v1529
        %v1562 = vadd.f32 %v1494, %v1530
        %v1563 = vlaneseq
        %v1564 = vshrl.u32 %v1563, 7
        %v1565 = vsub.s32 1, %v1564
        %v1566 = vrot.slane %v373, %v1565
        %v1567 = vmul.f32 %v323, %v1566
        %v1568 = vmul.f32 %v324, %v1566
        %v1569 = vmul.f32 %v325, %v1566
        %v1570 = vmul.f32 %v326, %v1566
        %v1571 = vmul.f32 %v327, %v1566
        %v1572 = vmul.f32 %v328, %v1566
        %v1573 = vmul.f32 %v329, %v1566
        %v1574 = vmul.f32 %v330, %v1566
        %v1575 = vmul.f32 %v331, %v1566
        %v1576 = vmul.f32 %v332, %v1566
        %v1577 = vmul.f32 %v333, %v1566
        %v1578 = vmul.f32 %v334, %v1566
        %v1579 = vmul.f32 %v335, %v1566
        %v1580 = vmul.f32 %v336, %v1566
        %v1581 = vmul.f32 %v337, %v1566
        %v1582 = vmul.f32 %v338, %v1566
        %v1583 = vmul.f32 %v339, %v1566
        %v1584 = vmul.f32 %v340, %v1566
        %v1585 = vmul.f32 %v341, %v1566
        %v1586 = vmul.f32 %v342, %v1566
        %v1587 = vmul.f32 %v343, %v1566
        %v1588 = vmul.f32 %v344, %v1566
        %v1589 = vmul.f32 %v345, %v1566
        %v1590 = vmul.f32 %v346, %v1566
        %v1591 = vmul.f32 %v347, %v1566
        %v1592 = vmul.f32 %v348, %v1566
        %v1593 = vmul.f32 %v349, %v1566
        %v1594 = vmul.f32 %v350, %v1566
        %v1595 = vmul.f32 %v351, %v1566
        %v1596 = vmul.f32 %v352, %v1566
        %v1597 = vmul.f32 %v353, %v1566
        %v1598 = vmul.f32 %v354, %v1566
        %v1599 = vmul.f32 %v355, %v1566
        %v1600 = vmul.f32 %v356, %v1566
        %v1601 = vmul.f32 %v357, %v1566
        %v1602 = vmul.f32 %v358, %v1566
        %v1603 = vmul.f32 %v359, %v1566
        %v1604 = vmul.f32 %v360, %v1566
        %v1605 = vmul.f32 %v361, %v1566
        %v1606 = vmul.f32 %v362, %v1566
        %v1607 = vmul.f32 %v363, %v1566
        %v1608 = vmul.f32 %v364, %v1566
        %v1609 = vmul.f32 %v365, %v1566
        %v1610 = vmul.f32 %v366, %v1566
        %v1611 = vmul.f32 %v367, %v1566
        %v1612 = vmul.f32 %v368, %v1566
        %v1613 = vmul.f32 %v369, %v1566
        %v1614 = vmul.f32 %v370, %v1566
        %v1663 = vrot.slane %v1567, 1
        %v1664 = vrot.slane %v1568, 1
        %v1665 = vsel %vm549, %v1663, %v1664
        %v1666 = vrot.slane %v1569, 1
        %v1667 = vsel %vm549, %v1664, %v1666
        %v1668 = vrot.slane %v1570, 1
        %v1669 = vrot.slane %v1571, 1
        %v1670 = vsel %vm549, %v1668, %v1669
        %v1671 = vrot.slane %v1572, 1
        %v1672 = vsel %vm549, %v1669, %v1671
        %v1673 = vrot.slane %v1573, 1
        %v1674 = vrot.slane %v1574, 1
        %v1675 = vsel %vm549, %v1673, %v1674
        %v1676 = vrot.slane %v1575, 1
        %v1677 = vsel %vm549, %v1674, %v1676
        %v1678 = vrot.slane %v1576, 1
        %v1679 = vrot.slane %v1577, 1
        %v1680 = vsel %vm549, %v1678, %v1679
        %v1681 = vrot.slane %v1578, 1
        %v1682 = vsel %vm549, %v1679, %v1681
        %v1683 = vrot.slane %v1579, 1
        %v1684 = vrot.slane %v1580, 1
        %v1685 = vsel %vm549, %v1683, %v1684
        %v1686 = vrot.slane %v1581, 1
        %v1687 = vsel %vm549, %v1684, %v1686
        %v1688 = vrot.slane %v1582, 1
        %v1689 = vrot.slane %v1583, 1
        %v1690 = vsel %vm549, %v1688, %v1689
        %v1691 = vrot.slane %v1584, 1
        %v1692 = vsel %vm549, %v1689, %v1691
        %v1693 = vrot.slane %v1585, 1
        %v1694 = vrot.slane %v1586, 1
        %v1695 = vsel %vm549, %v1693, %v1694
        %v1696 = vrot.slane %v1587, 1
        %v1697 = vsel %vm549, %v1694, %v1696
        %v1698 = vrot.slane %v1588, 1
        %v1699 = vrot.slane %v1589, 1
        %v1700 = vsel %vm549, %v1698, %v1699
        %v1701 = vrot.slane %v1590, 1
        %v1702 = vsel %vm549, %v1699, %v1701
        %v1703 = vrot.slane %v1591, 1
        %v1704 = vrot.slane %v1592, 1
        %v1705 = vsel %vm549, %v1703, %v1704
        %v1706 = vrot.slane %v1593, 1
        %v1707 = vsel %vm549, %v1704, %v1706
        %v1708 = vrot.slane %v1594, 1
        %v1709 = vrot.slane %v1595, 1
        %v1710 = vsel %vm549, %v1708, %v1709
        %v1711 = vrot.slane %v1596, 1
        %v1712 = vsel %vm549, %v1709, %v1711
        %v1713 = vrot.slane %v1597, 1
        %v1714 = vrot.slane %v1598, 1
        %v1715 = vsel %vm549, %v1713, %v1714
        %v1716 = vrot.slane %v1599, 1
        %v1717 = vsel %vm549, %v1714, %v1716
        %v1718 = vrot.slane %v1600, 1
        %v1719 = vrot.slane %v1601, 1
        %v1720 = vsel %vm549, %v1718, %v1719
        %v1721 = vrot.slane %v1602, 1
        %v1722 = vsel %vm549, %v1719, %v1721
        %v1723 = vrot.slane %v1603, 1
        %v1724 = vrot.slane %v1604, 1
        %v1725 = vsel %vm549, %v1723, %v1724
        %v1726 = vrot.slane %v1605, 1
        %v1727 = vsel %vm549, %v1724, %v1726
        %v1728 = vrot.slane %v1606, 1
        %v1729 = vrot.slane %v1607, 1
        %v1730 = vsel %vm549, %v1728, %v1729
        %v1731 = vrot.slane %v1608, 1
        %v1732 = vsel %vm549, %v1729, %v1731
        %v1733 = vrot.slane %v1609, 1
        %v1734 = vrot.slane %v1610, 1
        %v1735 = vsel %vm549, %v1733, %v1734
        %v1736 = vrot.slane %v1611, 1
        %v1737 = vsel %vm549, %v1734, %v1736
        %v1738 = vrot.slane %v1612, 1
        %v1739 = vrot.slane %v1613, 1
        %v1740 = vsel %vm549, %v1738, %v1739
        %v1741 = vrot.slane %v1614, 1
        %v1742 = vsel %vm549, %v1739, %v1741
        %v1775 = vadd.f32 %v1531, %v1665
        %v1776 = vadd.f32 %v1532, %v1667
        %v1777 = vadd.f32 %v1533, %v1670
        %v1778 = vadd.f32 %v1534, %v1672
        %v1779 = vadd.f32 %v1535, %v1675
        %v1780 = vadd.f32 %v1536, %v1677
        %v1781 = vadd.f32 %v1537, %v1680
        %v1782 = vadd.f32 %v1538, %v1682
        %v1783 = vadd.f32 %v1539, %v1685
        %v1784 = vadd.f32 %v1540, %v1687
        %v1785 = vadd.f32 %v1541, %v1690
        %v1786 = vadd.f32 %v1542, %v1692
        %v1787 = vadd.f32 %v1543, %v1695
        %v1788 = vadd.f32 %v1544, %v1697
        %v1789 = vadd.f32 %v1545, %v1700
        %v1790 = vadd.f32 %v1546, %v1702
        %v1791 = vadd.f32 %v1547, %v1705
        %v1792 = vadd.f32 %v1548, %v1707
        %v1793 = vadd.f32 %v1549, %v1710
        %v1794 = vadd.f32 %v1550, %v1712
        %v1795 = vadd.f32 %v1551, %v1715
        %v1796 = vadd.f32 %v1552, %v1717
        %v1797 = vadd.f32 %v1553, %v1720
        %v1798 = vadd.f32 %v1554, %v1722
        %v1799 = vadd.f32 %v1555, %v1725
        %v1800 = vadd.f32 %v1556, %v1727
        %v1801 = vadd.f32 %v1557, %v1730
        %v1802 = vadd.f32 %v1558, %v1732
        %v1803 = vadd.f32 %v1559, %v1735
        %v1804 = vadd.f32 %v1560, %v1737
        %v1805 = vadd.f32 %v1561, %v1740
        %v1806 = vadd.f32 %v1562, %v1742
        %v1807 = vlaneseq
        %v1808 = vshrl.u32 %v1807, 7
        %v1809 = vsub.s32 2, %v1808
        %v1810 = vrot.slane %v373, %v1809
        %v1811 = vmul.f32 %v323, %v1810
        %v1812 = vmul.f32 %v324, %v1810
        %v1813 = vmul.f32 %v325, %v1810
        %v1814 = vmul.f32 %v326, %v1810
        %v1815 = vmul.f32 %v327, %v1810
        %v1816 = vmul.f32 %v328, %v1810
        %v1817 = vmul.f32 %v329, %v1810
        %v1818 = vmul.f32 %v330, %v1810
        %v1819 = vmul.f32 %v331, %v1810
        %v1820 = vmul.f32 %v332, %v1810
        %v1821 = vmul.f32 %v333, %v1810
        %v1822 = vmul.f32 %v334, %v1810
        %v1823 = vmul.f32 %v335, %v1810
        %v1824 = vmul.f32 %v336, %v1810
        %v1825 = vmul.f32 %v337, %v1810
        %v1826 = vmul.f32 %v338, %v1810
        %v1827 = vmul.f32 %v339, %v1810
        %v1828 = vmul.f32 %v340, %v1810
        %v1829 = vmul.f32 %v341, %v1810
        %v1830 = vmul.f32 %v342, %v1810
        %v1831 = vmul.f32 %v343, %v1810
        %v1832 = vmul.f32 %v344, %v1810
        %v1833 = vmul.f32 %v345, %v1810
        %v1834 = vmul.f32 %v346, %v1810
        %v1835 = vmul.f32 %v347, %v1810
        %v1836 = vmul.f32 %v348, %v1810
        %v1837 = vmul.f32 %v349, %v1810
        %v1838 = vmul.f32 %v350, %v1810
        %v1839 = vmul.f32 %v351, %v1810
        %v1840 = vmul.f32 %v352, %v1810
        %v1841 = vmul.f32 %v353, %v1810
        %v1842 = vmul.f32 %v354, %v1810
        %v1843 = vmul.f32 %v355, %v1810
        %v1844 = vmul.f32 %v356, %v1810
        %v1845 = vmul.f32 %v357, %v1810
        %v1846 = vmul.f32 %v358, %v1810
        %v1847 = vmul.f32 %v359, %v1810
        %v1848 = vmul.f32 %v360, %v1810
        %v1849 = vmul.f32 %v361, %v1810
        %v1850 = vmul.f32 %v362, %v1810
        %v1851 = vmul.f32 %v363, %v1810
        %v1852 = vmul.f32 %v364, %v1810
        %v1853 = vmul.f32 %v365, %v1810
        %v1854 = vmul.f32 %v366, %v1810
        %v1855 = vmul.f32 %v367, %v1810
        %v1856 = vmul.f32 %v368, %v1810
        %v1857 = vmul.f32 %v369, %v1810
        %v1858 = vmul.f32 %v370, %v1810
        %v1907 = vrot.slane %v1811, 2
        %v1908 = vrot.slane %v1812, 2
        %v1909 = vsel %vm794, %v1907, %v1908
        %v1910 = vrot.slane %v1813, 2
        %v1911 = vsel %vm794, %v1908, %v1910
        %v1912 = vrot.slane %v1814, 2
        %v1913 = vrot.slane %v1815, 2
        %v1914 = vsel %vm794, %v1912, %v1913
        %v1915 = vrot.slane %v1816, 2
        %v1916 = vsel %vm794, %v1913, %v1915
        %v1917 = vrot.slane %v1817, 2
        %v1918 = vrot.slane %v1818, 2
        %v1919 = vsel %vm794, %v1917, %v1918
        %v1920 = vrot.slane %v1819, 2
        %v1921 = vsel %vm794, %v1918, %v1920
        %v1922 = vrot.slane %v1820, 2
        %v1923 = vrot.slane %v1821, 2
        %v1924 = vsel %vm794, %v1922, %v1923
        %v1925 = vrot.slane %v1822, 2
        %v1926 = vsel %vm794, %v1923, %v1925
        %v1927 = vrot.slane %v1823, 2
        %v1928 = vrot.slane %v1824, 2
        %v1929 = vsel %vm794, %v1927, %v1928
        %v1930 = vrot.slane %v1825, 2
        %v1931 = vsel %vm794, %v1928, %v1930
        %v1932 = vrot.slane %v1826, 2
        %v1933 = vrot.slane %v1827, 2
        %v1934 = vsel %vm794, %v1932, %v1933
        %v1935 = vrot.slane %v1828, 2
        %v1936 = vsel %vm794, %v1933, %v1935
        %v1937 = vrot.slane %v1829, 2
        %v1938 = vrot.slane %v1830, 2
        %v1939 = vsel %vm794, %v1937, %v1938
        %v1940 = vrot.slane %v1831, 2
        %v1941 = vsel %vm794, %v1938, %v1940
        %v1942 = vrot.slane %v1832, 2
        %v1943 = vrot.slane %v1833, 2
        %v1944 = vsel %vm794, %v1942, %v1943
        %v1945 = vrot.slane %v1834, 2
        %v1946 = vsel %vm794, %v1943, %v1945
        %v1947 = vrot.slane %v1835, 2
        %v1948 = vrot.slane %v1836, 2
        %v1949 = vsel %vm794, %v1947, %v1948
        %v1950 = vrot.slane %v1837, 2
        %v1951 = vsel %vm794, %v1948, %v1950
        %v1952 = vrot.slane %v1838, 2
        %v1953 = vrot.slane %v1839, 2
        %v1954 = vsel %vm794, %v1952, %v1953
        %v1955 = vrot.slane %v1840, 2
        %v1956 = vsel %vm794, %v1953, %v1955
        %v1957 = vrot.slane %v1841, 2
        %v1958 = vrot.slane %v1842, 2
        %v1959 = vsel %vm794, %v1957, %v1958
        %v1960 = vrot.slane %v1843, 2
        %v1961 = vsel %vm794, %v1958, %v1960
        %v1962 = vrot.slane %v1844, 2
        %v1963 = vrot.slane %v1845, 2
        %v1964 = vsel %vm794, %v1962, %v1963
        %v1965 = vrot.slane %v1846, 2
        %v1966 = vsel %vm794, %v1963, %v1965
        %v1967 = vrot.slane %v1847, 2
        %v1968 = vrot.slane %v1848, 2
        %v1969 = vsel %vm794, %v1967, %v1968
        %v1970 = vrot.slane %v1849, 2
        %v1971 = vsel %vm794, %v1968, %v1970
        %v1972 = vrot.slane %v1850, 2
        %v1973 = vrot.slane %v1851, 2
        %v1974 = vsel %vm794, %v1972, %v1973
        %v1975 = vrot.slane %v1852, 2
        %v1976 = vsel %vm794, %v1973, %v1975
        %v1977 = vrot.slane %v1853, 2
        %v1978 = vrot.slane %v1854, 2
        %v1979 = vsel %vm794, %v1977, %v1978
        %v1980 = vrot.slane %v1855, 2
        %v1981 = vsel %vm794, %v1978, %v1980
        %v1982 = vrot.slane %v1856, 2
        %v1983 = vrot.slane %v1857, 2
        %v1984 = vsel %vm794, %v1982, %v1983
        %v1985 = vrot.slane %v1858, 2
        %v1986 = vsel %vm794, %v1983, %v1985
        %v2019 = vadd.f32 %v1775, %v1909
        %v2020 = vadd.f32 %v1776, %v1911
        %v2021 = vadd.f32 %v1777, %v1914
        %v2022 = vadd.f32 %v1778, %v1916
        %v2023 = vadd.f32 %v1779, %v1919
        %v2024 = vadd.f32 %v1780, %v1921
        %v2025 = vadd.f32 %v1781, %v1924
        %v2026 = vadd.f32 %v1782, %v1926
        %v2027 = vadd.f32 %v1783, %v1929
        %v2028 = vadd.f32 %v1784, %v1931
        %v2029 = vadd.f32 %v1785, %v1934
        %v2030 = vadd.f32 %v1786, %v1936
        %v2031 = vadd.f32 %v1787, %v1939
        %v2032 = vadd.f32 %v1788, %v1941
        %v2033 = vadd.f32 %v1789, %v1944
        %v2034 = vadd.f32 %v1790, %v1946
        %v2035 = vadd.f32 %v1791, %v1949
        %v2036 = vadd.f32 %v1792, %v1951
        %v2037 = vadd.f32 %v1793, %v1954
        %v2038 = vadd.f32 %v1794, %v1956
        %v2039 = vadd.f32 %v1795, %v1959
        %v2040 = vadd.f32 %v1796, %v1961
        %v2041 = vadd.f32 %v1797, %v1964
        %v2042 = vadd.f32 %v1798, %v1966
        %v2043 = vadd.f32 %v1799, %v1969
        %v2044 = vadd.f32 %v1800, %v1971
        %v2045 = vadd.f32 %v1801, %v1974
        %v2046 = vadd.f32 %v1802, %v1976
        %v2047 = vadd.f32 %v1803, %v1979
        %v2048 = vadd.f32 %v1804, %v1981
        %v2049 = vadd.f32 %v1805, %v1984
        %v2050 = vadd.f32 %v1806, %v1986
        %v2051 = vmax.f32 %v2019, 0.0
        %v2052 = vmax.f32 %v2020, 0.0
        %v2053 = vmax.f32 %v2021, 0.0
        %v2054 = vmax.f32 %v2022, 0.0
        %v2055 = vmax.f32 %v2023, 0.0
        %v2056 = vmax.f32 %v2024, 0.0
        %v2057 = vmax.f32 %v2025, 0.0
        %v2058 = vmax.f32 %v2026, 0.0
        %v2059 = vmax.f32 %v2027, 0.0
        %v2060 = vmax.f32 %v2028, 0.0
        %v2061 = vmax.f32 %v2029, 0.0
        %v2062 = vmax.f32 %v2030, 0.0
        %v2063 = vmax.f32 %v2031, 0.0
        %v2064 = vmax.f32 %v2032, 0.0
        %v2065 = vmax.f32 %v2033, 0.0
        %v2066 = vmax.f32 %v2034, 0.0
        %v2067 = vmax.f32 %v2035, 0.0
        %v2068 = vmax.f32 %v2036, 0.0
        %v2069 = vmax.f32 %v2037, 0.0
        %v2070 = vmax.f32 %v2038, 0.0
        %v2071 = vmax.f32 %v2039, 0.0
        %v2072 = vmax.f32 %v2040, 0.0
        %v2073 = vmax.f32 %v2041, 0.0
        %v2074 = vmax.f32 %v2042, 0.0
        %v2075 = vmax.f32 %v2043, 0.0
        %v2076 = vmax.f32 %v2044, 0.0
        %v2077 = vmax.f32 %v2045, 0.0
        %v2078 = vmax.f32 %v2046, 0.0
        %v2079 = vmax.f32 %v2047, 0.0
        %v2080 = vmax.f32 %v2048, 0.0
        %v2081 = vmax.f32 %v2049, 0.0
        %v2082 = vmax.f32 %v2050, 0.0
        %v2083 = vld [vmem:[%s3] sm:$0xff]
        %v2085 = vsel %vm196, %v2083, 0
        %v2088 = vsel %vm196, %v2051, 0
        %v2091 = vsel %vm196, %v2052, 0
        %v2094 = vsel %vm196, %v2053, 0
        %v2097 = vsel %vm196, %v2054, 0
        %v2100 = vsel %vm196, %v2055, 0
        %v2103 = vsel %vm196, %v2056, 0
        %v2106 = vsel %vm196, %v2057, 0
        %v2109 = vsel %vm196, %v2058, 0
        %v2112 = vsel %vm196, %v2059, 0
        %v2115 = vsel %vm196, %v2060, 0
        %v2118 = vsel %vm196, %v2061, 0
        %v2121 = vsel %vm196, %v2062, 0
        %v2124 = vsel %vm196, %v2063, 0
        %v2127 = vsel %vm196, %v2064, 0
        %v2130 = vsel %vm196, %v2065, 0
        %v2133 = vsel %vm196, %v2066, 0
        %v2136 = vsel %vm196, %v2067, 0
        %v2139 = vsel %vm196, %v2068, 0
        %v2142 = vsel %vm196, %v2069, 0
        %v2145 = vsel %vm196, %v2070, 0
        %v2148 = vsel %vm196, %v2071, 0
        %v2151 = vsel %vm196, %v2072, 0
        %v2154 = vsel %vm196, %v2073, 0
        %v2157 = vsel %vm196, %v2074, 0
        %v2160 = vsel %vm196, %v2075, 0
        %v2163 = vsel %vm196, %v2076, 0
        %v2166 = vsel %vm196, %v2077, 0
        %v2169 = vsel %vm196, %v2078, 0
        %v2172 = vsel %vm196, %v2079, 0
        %v2175 = vsel %vm196, %v2080, 0
        %v2178 = vsel %vm196, %v2081, 0
        %v2181 = vsel %vm196, %v2082, 0
        %2183 = vmatprep.subr.mxu0 0.0
        %2184 = vmatpush1.xpose.msra.mxu0 %v2088
        %2185 = vmatprep.subr.mxu0 0.0
        %2186 = vmatpush1.xpose.msra.mxu0 %v2091
        %2187 = vmatprep.subr.mxu0 0.0
        %2188 = vmatpush1.xpose.msra.mxu0 %v2094
        %2189 = vmatprep.subr.mxu0 0.0
        %2190 = vmatpush1.xpose.msra.mxu0 %v2097
        %2191 = vmatprep.subr.mxu0 0.0
        %2192 = vmatpush1.xpose.msra.mxu0 %v2100
        %2193 = vmatprep.subr.mxu0 0.0
        %2194 = vmatpush1.xpose.msra.mxu0 %v2103
        %2195 = vmatprep.subr.mxu0 0.0
        %2196 = vmatpush1.xpose.msra.mxu0 %v2106
        %2197 = vmatprep.subr.mxu0 0.0
        %2198 = vmatpush1.xpose.msra.mxu0 %v2109
        %2199 = vmatprep.subr.mxu0 0.0
        %2200 = vmatpush1.xpose.msra.mxu0 %v2112
        %2201 = vmatprep.subr.mxu0 0.0
        %2202 = vmatpush1.xpose.msra.mxu0 %v2115
        %2203 = vmatprep.subr.mxu0 0.0
        %2204 = vmatpush1.xpose.msra.mxu0 %v2118
        %2205 = vmatprep.subr.mxu0 0.0
        %2206 = vmatpush1.xpose.msra.mxu0 %v2121
        %2207 = vmatprep.subr.mxu0 0.0
        %2208 = vmatpush1.xpose.msra.mxu0 %v2124
        %2209 = vmatprep.subr.mxu0 0.0
        %2210 = vmatpush1.xpose.msra.mxu0 %v2127
        %2211 = vmatprep.subr.mxu0 0.0
        %2212 = vmatpush1.xpose.msra.mxu0 %v2130
        %2213 = vmatprep.subr.mxu0 0.0
        %2214 = vmatpush1.xpose.msra.mxu0 %v2133
        %2215 = vmatprep.subr.mxu0 0.0
        %2216 = vmatpush1.xpose.msra.mxu0 %v2136
        %2217 = vmatprep.subr.mxu0 0.0
        %2218 = vmatpush1.xpose.msra.mxu0 %v2139
        %2219 = vmatprep.subr.mxu0 0.0
        %2220 = vmatpush1.xpose.msra.mxu0 %v2142
        %2221 = vmatprep.subr.mxu0 0.0
        %2222 = vmatpush1.xpose.msra.mxu0 %v2145
        %2223 = vmatprep.subr.mxu0 0.0
        %2224 = vmatpush1.xpose.msra.mxu0 %v2148
        %2225 = vmatprep.subr.mxu0 0.0
        %2226 = vmatpush1.xpose.msra.mxu0 %v2151
        %2227 = vmatprep.subr.mxu0 0.0
        %2228 = vmatpush1.xpose.msra.mxu0 %v2154
        %2229 = vmatprep.subr.mxu0 0.0
        %2230 = vmatpush1.xpose.msra.mxu0 %v2157
        %2231 = vmatprep.subr.mxu0 0.0
        %2232 = vmatpush1.xpose.msra.mxu0 %v2160
        %2233 = vmatprep.subr.mxu0 0.0
        %2234 = vmatpush1.xpose.msra.mxu0 %v2163
        %2235 = vmatprep.subr.mxu0 0.0
        %2236 = vmatpush1.xpose.msra.mxu0 %v2166
        %2237 = vmatprep.subr.mxu0 0.0
        %2238 = vmatpush1.xpose.msra.mxu0 %v2169
        %2239 = vmatprep.subr.mxu0 0.0
        %2240 = vmatpush1.xpose.msra.mxu0 %v2172
        %2241 = vmatprep.subr.mxu0 0.0
        %2242 = vmatpush1.xpose.msra.mxu0 %v2175
        %2243 = vmatprep.subr.mxu0 0.0
        %2244 = vmatpush1.xpose.msra.mxu0 %v2178
        %2245 = vmatprep.subr.mxu0 0.0
        %2246 = vmatpush1.xpose.msra.mxu0 %v2181
        %2247 = vmatprep.mubr.f32.mxu0 0.0
        %2248 = vmatmul.mubr.f32.gmra.mrb[0].mxu0 %v2085
        %v2249 = vpop.f32.mrb[0].mxu0
        %v2250 = vadd.f32 0.0, %v2249
        %v2251 = vpop.f32.mrb[0].mxu0
        %v2252 = vadd.f32 0.0, %v2251
        %2253 = vdwg.mxu0
        %2254 = vst [vmem:[%s190] sm:$0xff] %v2250
        %2255 = vst [vmem:[%s190 + $0x8] sm:$0xff] %v2252
        %s2256 = sand.u32 %s115, 1
        %s2257 = scalar_lea.sflag [#allocation4], %s2256
        %s2258 = sand.u32 %s115, 1
        %s2259 = smul.addr %s2258, 16
        %s2260 = scalar_lea.vmem [#allocation3], %s2259
        // Predicated region
        $region37: #{tpu_custom_call.1} parent=35 // pred_check
          %p2261 = pneg %p125
        $region38: #{tpu_custom_call.1} parent=35 // pred_check_branch
          %2263 = sbr.rel (%p2261) target = $region40
        $region39: #{tpu_custom_call.1} parent=35 // pred_region
          %s2265 = ssub.s32 256, 256
          %2266 = vsyncadd %s2257, %s2265
          %s2267 = smul.addr %s18, 2
          %s2268 = smul.addr %s2267, 128
          %s2269 = scalar_lea.hbm %s4, %s2268
          %s2271 = sshll.u32 %s2260, 4
          %s2272 = int_to_ptr.vmem [resolvable:$true] %s2271
          %2274 = dma.vmem_to_hbm [thread:$0]  %s2272, 256, %s2269, %s2257
        $region40: #{tpu_custom_call.1} parent=35 // pred_fallthru
          _
      $region36: #{tpu_custom_call.1} parent=5 // pred_fallthru
        _
      %p2275 = scmp.le.s32.totalorder 2, %s13
      // Predicated region
      $region41: #{tpu_custom_call.1} parent=5 // pred_check
        %p2276 = pneg %p2275
      $region42: #{tpu_custom_call.1} parent=5 // pred_check_branch
        %2278 = sbr.rel (%p2276) target = $region44
      $region43: #{tpu_custom_call.1} parent=5 // pred_region
        %s2279 = ssub.s32 %s13, 2
        // Predicated region
        $region45: #{tpu_custom_call.1} parent=43 // pred_check
          %p2280 = pneg %p131
        $region46: #{tpu_custom_call.1} parent=43 // pred_check_branch
          %2282 = sbr.rel (%p2280) target = $region48
        $region47: #{tpu_custom_call.1} parent=43 // pred_region
          %s2283 = sand.u32 %s116, 1
          %s2284 = scalar_lea.sflag [#allocation4], %s2283
          %s2285 = sand.u32 %s116, 1
          %s2286 = smul.addr %s2285, 16
          %s2287 = scalar_lea.vmem [#allocation3], %s2286
          %2288 = dma.done %s2284, 256
        $region48: #{tpu_custom_call.1} parent=43 // pred_fallthru
          _
      $region44: #{tpu_custom_call.1} parent=5 // pred_fallthru
        _
    $region6: #{tpu_custom_call.1} parent=1 // loop_footer
      %s17 = sadd.s32 1, %s13
    $region7: #{tpu_custom_call.1} parent=1 // loop_footer_branch
      %12 = sbr.rel target = $region3
    $region8: #{tpu_custom_call.1} parent=1 // loop_exit
      _
    %2289 = vsyncpa [#allocation4], 1
    %s2290 = scalar_lea.sflag [#allocation4], 1
    %2291 = vsyncpa %s2290, 1

</llo_original>
